<compile_context>
chip_gen: v7x
topology: tpu7x:2x2x1
jax: 0.10.0
libtpu: 0.0.40
codegen_flags: <defaults>
</compile_context>

<pallas_src>
import functools
from typing import NamedTuple, Tuple

import jax
import jax.numpy as jnp
from jax.experimental import pallas as pl
from jax.experimental.pallas import tpu as pltpu

NEG_SLOPE = 0.01        # nn.LeakyReLU default
_LANES = 128
_SUBLANES = 8


def _round_up(n, m):
    return ((n + m - 1) // m) * m


def _leaky_relu(v):
    return jnp.where(v >= 0, v, NEG_SLOPE * v)


class SubNetMeta(NamedTuple):
    in_size: int
    c: int
    out_dim: int
    offsets: Tuple[int, ...]   # slab row offsets of w1,b1,w2,b2,w3,b3,w4,b4


def prepare_params(params):
    """One-time prep: transpose PyTorch (out,in) weights to (in,out) and pack
    each as a full zero-padded (128,128) tile, plus 128-lane bias rows, into a
    single (544, 128) float32 slab (one DMA, VMEM-resident across grid steps)."""
    (w1, b1), (w2, b2), (w3, b3), (w4, b4) = (
        params["fc1"], params["fc2"], params["fc3"], params["fc4"])
    c = int(w1.shape[0])
    in_size = int(w1.shape[1])
    out_dim = int(w4.shape[0])
    assert max(in_size, 2 * c, out_dim) <= _LANES, "layer width must fit one lane tile"

    weights = [jnp.asarray(w, jnp.float32).T for w in (w1, w2, w3, w4)]   # (in, out)
    biases = [jnp.asarray(b, jnp.float32) for b in (b1, b2, b3, b4)]

    n_rows = 4 * _LANES + 4 * _SUBLANES            # 4 weight tiles + 4 bias regions
    slab = jnp.zeros((n_rows, _LANES), jnp.float32)

    w_offsets = []
    for li, w in enumerate(weights):
        off = li * _LANES                          # 128-aligned weight tile
        w_offsets.append(off)
        slab = slab.at[off:off + w.shape[0], :w.shape[1]].set(w)

    b_offsets = []
    for li, b in enumerate(biases):
        off = 4 * _LANES + li * _SUBLANES          # 8-aligned bias row
        b_offsets.append(off)
        slab = slab.at[off, :b.shape[0]].set(b)

    offsets = (w_offsets[0], b_offsets[0], w_offsets[1], b_offsets[1],
               w_offsets[2], b_offsets[2], w_offsets[3], b_offsets[3])
    return slab, SubNetMeta(in_size, c, out_dim, offsets)


def _subnet_kernel(x_ref, p_ref, o_ref, *, meta: SubNetMeta):
    # TODO(synk): PyTorch module is float64; no f64 path on TPU Pallas, compute in f32.
    in_size, out_dim = meta.in_size, meta.out_dim
    ow1, ob1, ow2, ob2, ow3, ob3, ow4, ob4 = meta.offsets

    h = x_ref[...]                                                   # (TB, in_size)
    # FC1 + LeakyReLU  (weights zero-padded to full 128 lanes -> no lane masks)
    h = jnp.dot(h, p_ref[ow1:ow1 + in_size, :], preferred_element_type=jnp.float32)
    h = _leaky_relu(h + p_ref[ob1:ob1 + 1, :])
    # FC2 + LeakyReLU  (full 128x128 zero-padded tile; padded rows/cols are zero)
    h = jnp.dot(h, p_ref[ow2:ow2 + _LANES, :], preferred_element_type=jnp.float32)
    h = _leaky_relu(h + p_ref[ob2:ob2 + 1, :])
    # FC3 + LeakyReLU
    h = jnp.dot(h, p_ref[ow3:ow3 + _LANES, :], preferred_element_type=jnp.float32)
    h = _leaky_relu(h + p_ref[ob3:ob3 + 1, :])
    # FC4 (no activation); slice to out_dim only at the final store
    h = jnp.dot(h, p_ref[ow4:ow4 + _LANES, :], preferred_element_type=jnp.float32)
    h = h + p_ref[ob4:ob4 + 1, :]
    o_ref[...] = h[:, :out_dim]


def subnet_forward(x, prepared, *, tb=None):
    """x: (B, input_size).  prepared: output of prepare_params().  Returns (B, out_dim)."""
    slab, meta = prepared
    B = x.shape[0]
    assert x.shape[1] == meta.in_size
    x = x.astype(jnp.float32)

    # Tile-size heuristic: one step for small/medium B (v5e/v6e single TC),
    # 2 even parallel steps for large B (v7x dual TC); cap x tile at ~4 MiB.
    bytes_per_row = meta.in_size * 4
    tb_cap = max(_SUBLANES, ((4 << 20) // bytes_per_row) // _SUBLANES * _SUBLANES)
    if tb is None:
        tb = B if B < 2048 else pl.cdiv(B, 2)
    TB = min(_round_up(max(int(tb), 1), _SUBLANES), _round_up(B, _SUBLANES), tb_cap)
    grid = (pl.cdiv(B, TB),)

    kernel = functools.partial(_subnet_kernel, meta=meta)
    out = pl.pallas_call(
        kernel,
        out_shape=jax.ShapeDtypeStruct((B, meta.out_dim), jnp.float32),
        grid=grid,
        in_specs=[
            pl.BlockSpec((TB, meta.in_size), lambda i: (i, 0)),   # batch-tiled x
            pl.BlockSpec(slab.shape, lambda i: (0, 0)),           # VMEM-resident params
        ],
        out_specs=pl.BlockSpec((TB, meta.out_dim), lambda i: (i, 0)),
        compiler_params=pltpu.CompilerParams(
            dimension_semantics=("parallel",)),   # both TCs on v7x; harmless elsewhere
    )(x, slab)
    return out


def init_params(key, input_size, c=3, stress_fit=False):
    """Deterministic synthetic init mirroring the PyTorch Linear shapes (out, in)."""
    out4 = 3 if stress_fit else 1
    shapes = {
        "fc1": ((c, input_size), (c,)),
        "fc2": ((2 * c, c), (2 * c,)),
        "fc3": ((c, 2 * c), (c,)),
        "fc4": ((out4, c), (out4,)),
    }
    params = {}
    for name, (ws, bs) in shapes.items():
        key, kw, kb = jax.random.split(key, 3)
        fan_in = ws[1]
        bound = 1.0 / float(jnp.sqrt(fan_in))
        params[name] = (
            jax.random.uniform(kw, ws, jnp.float32, -bound, bound),
            jax.random.uniform(kb, bs, jnp.float32, -bound, bound),
        )
    return params


def subnet_reference(x, params):
    """Plain-JAX reference of the PyTorch forward (f32)."""
    h = x
    for name in ("fc1", "fc2", "fc3"):
        w, b = params[name]
        z = h @ w.T + b
        h = jnp.where(z >= 0, z, NEG_SLOPE * z)
    w, b = params["fc4"]
    return h @ w.T + b


if __name__ == "__main__":
    key = jax.random.PRNGKey(0)
    k_x, k_p, k_ps = jax.random.split(key, 3)

    batch, input_size, c = 256, 16, 3
    x = jax.random.normal(k_x, (batch, input_size), dtype=jnp.float32)
    params = init_params(k_p, input_size, c=c, stress_fit=False)
    prepared = prepare_params(params)      # one-time: transpose + zero-pad + pack weights
    ref = subnet_reference(x, params)

    # 1) Default path: single grid step, no wrapper-side padding copy.
    out = jax.block_until_ready(subnet_forward(x, prepared))
    assert out.shape == (batch, 1), out.shape
    assert jnp.allclose(out, ref, atol=1e-5, rtol=1e-5), "mismatch (grid=1)"

    # 2) Multi-step grid with a ragged last block (grid=3, last block partially valid).
    out2 = jax.block_until_ready(subnet_forward(x, prepared, tb=96))
    assert jnp.allclose(out2, ref, atol=1e-5, rtol=1e-5), "mismatch (ragged grid)"

    # 3) Tiny ragged batch: single ragged block, still no padding copy.
    out3 = jax.block_until_ready(subnet_forward(x[:13], prepared))
    assert out3.shape == (13, 1), out3.shape
    assert jnp.allclose(out3, ref[:13], atol=1e-5, rtol=1e-5), "mismatch (tiny batch)"

    # 4) stress_fit variant (out_dim=3).
    params_s = init_params(k_ps, input_size, c=c, stress_fit=True)
    prepared_s = prepare_params(params_s)
    out_s = jax.block_until_ready(subnet_forward(x, prepared_s))
    ref_s = subnet_reference(x, params_s)
    assert out_s.shape == (batch, 3), out_s.shape
    assert jnp.allclose(out_s, ref_s, atol=1e-5, rtol=1e-5), "mismatch (stress_fit)"

    print("KERNEL_OK")
</pallas_src>

<mosaic_0001>
module attributes {stable_mosaic.version = 11 : i64} {
  func.func @_subnet_kernel(%arg0: i32, %arg1: memref<256x16xf32, #tpu.memory_space<vmem>>, %arg2: memref<544x128xf32, #tpu.memory_space<vmem>>, %arg3: memref<256x1xf32, #tpu.memory_space<vmem>>) attributes {dimension_semantics = [#tpu.dimension_semantics<parallel>], iteration_bounds = array<i64: 1>, scalar_prefetch = 0 : i64, scratch_operands = 0 : i64, tpu.core_type = #tpu.core_type<tc>, window_params = [{transform_indices = @transform_0, window_bounds = array<i64: 256, 16>}, {pipeline_mode = #tpu.pipeline_mode<synchronous>, transform_indices = @transform_1, window_bounds = array<i64: 544, 128>}, {transform_indices = @transform_2, window_bounds = array<i64: 256, 1>}]} {
    %c0 = arith.constant 0 : index
    %c0_0 = arith.constant 0 : index
    %0 = vector.load %arg1[%c0, %c0_0] : memref<256x16xf32, #tpu.memory_space<vmem>>, vector<256x16xf32>
    %c0_1 = arith.constant 0 : index
    %c0_2 = arith.constant 0 : index
    %1 = vector.load %arg2[%c0_1, %c0_2] : memref<544x128xf32, #tpu.memory_space<vmem>>, vector<16x128xf32>
    %cst = arith.constant dense<0.000000e+00> : vector<256x128xf32>
    %2 = tpu.matmul %0, %1, %cst {dimension_numbers = #tpu.dot_dimension_numbers<[1], [0], [0], [1], [0, 0, 1, 1], [], []>} : vector<256x16xf32>, vector<16x128xf32>, vector<256x128xf32> -> vector<256x128xf32>
    %c512 = arith.constant 512 : index
    %c0_3 = arith.constant 0 : index
    %3 = vector.load %arg2[%c512, %c0_3] : memref<544x128xf32, #tpu.memory_space<vmem>>, vector<1x128xf32>
    %4 = vector.broadcast %3 : vector<1x128xf32> to vector<256x128xf32>
    %5 = arith.addf %2, %4 : vector<256x128xf32>
    %cst_4 = arith.constant 0.000000e+00 : f32
    %6 = vector.broadcast %cst_4 : f32 to vector<256x128xf32>
    %7 = arith.cmpf oge, %5, %6 : vector<256x128xf32>
    %cst_5 = arith.constant 0.00999999977 : f32
    %8 = vector.broadcast %cst_5 : f32 to vector<256x128xf32>
    %9 = arith.mulf %8, %5 : vector<256x128xf32>
    %10 = arith.select %7, %5, %9 : vector<256x128xi1>, vector<256x128xf32>
    %c128 = arith.constant 128 : index
    %c0_6 = arith.constant 0 : index
    %11 = vector.load %arg2[%c128, %c0_6] : memref<544x128xf32, #tpu.memory_space<vmem>>, vector<128x128xf32>
    %cst_7 = arith.constant dense<0.000000e+00> : vector<256x128xf32>
    %12 = tpu.matmul %10, %11, %cst_7 {dimension_numbers = #tpu.dot_dimension_numbers<[1], [0], [0], [1], [0, 0, 1, 1], [], []>} : vector<256x128xf32>, vector<128x128xf32>, vector<256x128xf32> -> vector<256x128xf32>
    %c520 = arith.constant 520 : index
    %c0_8 = arith.constant 0 : index
    %13 = vector.load %arg2[%c520, %c0_8] : memref<544x128xf32, #tpu.memory_space<vmem>>, vector<1x128xf32>
    %14 = vector.broadcast %13 : vector<1x128xf32> to vector<256x128xf32>
    %15 = arith.addf %12, %14 : vector<256x128xf32>
    %cst_9 = arith.constant 0.000000e+00 : f32
    %16 = vector.broadcast %cst_9 : f32 to vector<256x128xf32>
    %17 = arith.cmpf oge, %15, %16 : vector<256x128xf32>
    %cst_10 = arith.constant 0.00999999977 : f32
    %18 = vector.broadcast %cst_10 : f32 to vector<256x128xf32>
    %19 = arith.mulf %18, %15 : vector<256x128xf32>
    %20 = arith.select %17, %15, %19 : vector<256x128xi1>, vector<256x128xf32>
    %c256 = arith.constant 256 : index
    %c0_11 = arith.constant 0 : index
    %21 = vector.load %arg2[%c256, %c0_11] : memref<544x128xf32, #tpu.memory_space<vmem>>, vector<128x128xf32>
    %cst_12 = arith.constant dense<0.000000e+00> : vector<256x128xf32>
    %22 = tpu.matmul %20, %21, %cst_12 {dimension_numbers = #tpu.dot_dimension_numbers<[1], [0], [0], [1], [0, 0, 1, 1], [], []>} : vector<256x128xf32>, vector<128x128xf32>, vector<256x128xf32> -> vector<256x128xf32>
    %c528 = arith.constant 528 : index
    %c0_13 = arith.constant 0 : index
    %23 = vector.load %arg2[%c528, %c0_13] : memref<544x128xf32, #tpu.memory_space<vmem>>, vector<1x128xf32>
    %24 = vector.broadcast %23 : vector<1x128xf32> to vector<256x128xf32>
    %25 = arith.addf %22, %24 : vector<256x128xf32>
    %cst_14 = arith.constant 0.000000e+00 : f32
    %26 = vector.broadcast %cst_14 : f32 to vector<256x128xf32>
    %27 = arith.cmpf oge, %25, %26 : vector<256x128xf32>
    %cst_15 = arith.constant 0.00999999977 : f32
    %28 = vector.broadcast %cst_15 : f32 to vector<256x128xf32>
    %29 = arith.mulf %28, %25 : vector<256x128xf32>
    %30 = arith.select %27, %25, %29 : vector<256x128xi1>, vector<256x128xf32>
    %c384 = arith.constant 384 : index
    %c0_16 = arith.constant 0 : index
    %31 = vector.load %arg2[%c384, %c0_16] : memref<544x128xf32, #tpu.memory_space<vmem>>, vector<128x128xf32>
    %cst_17 = arith.constant dense<0.000000e+00> : vector<256x128xf32>
    %32 = tpu.matmul %30, %31, %cst_17 {dimension_numbers = #tpu.dot_dimension_numbers<[1], [0], [0], [1], [0, 0, 1, 1], [], []>} : vector<256x128xf32>, vector<128x128xf32>, vector<256x128xf32> -> vector<256x128xf32>
    %c536 = arith.constant 536 : index
    %c0_18 = arith.constant 0 : index
    %33 = vector.load %arg2[%c536, %c0_18] : memref<544x128xf32, #tpu.memory_space<vmem>>, vector<1x128xf32>
    %34 = vector.broadcast %33 : vector<1x128xf32> to vector<256x128xf32>
    %35 = arith.addf %32, %34 : vector<256x128xf32>
    %36 = vector.extract_strided_slice %35 {offsets = [0, 0], sizes = [256, 1], strides = [1, 1]} : vector<256x128xf32> to vector<256x1xf32>
    %c0_19 = arith.constant 0 : index
    %c0_20 = arith.constant 0 : index
    %37 = vector.load %arg3[%c0_19, %c0_20] : memref<256x1xf32, #tpu.memory_space<vmem>>, vector<256x1xf32>
    tpu.vector_store %arg3[%c0_19, %c0_20], %36 {strides = array<i32>} : memref<256x1xf32, #tpu.memory_space<vmem>>, vector<256x1xf32>,
    return
  }
  func.func @transform_0(%arg0: i32) -> (i32, i32) {
    %c0_i32 = arith.constant 0 : i32
    %c0_i32_0 = arith.constant 0 : i32
    return %arg0, %c0_i32 : i32, i32
  }
  func.func @transform_1(%arg0: i32) -> (i32, i32) {
    %c0_i32 = arith.constant 0 : i32
    %c0_i32_0 = arith.constant 0 : i32
    %c0_i32_1 = arith.constant 0 : i32
    return %c0_i32, %c0_i32_0 : i32, i32
  }
  func.func @transform_2(%arg0: i32) -> (i32, i32) {
    %c0_i32 = arith.constant 0 : i32
    %c0_i32_0 = arith.constant 0 : i32
    return %arg0, %c0_i32 : i32, i32
  }
}

</mosaic_0001>

<llo_original>
// kernel: tpu_custom_call.1
$region0: #{tpu_custom_call.1}
  #allocation0 [shape = 'u32[]', space=smem, size = 0x4, offset = 0x4, fixed_abs, tag = 'smem constant byte address 0x4 - core index']
  #allocation1 [shape = 'u32[144,128]{1,0:T(1,128)}', space=vmem, size = 0x12000, scoped, tag = 'internal scratch']
  %s0 = inlined_call_operand.vmem [shape: f32[256,16], index: 0, kind: input, shape index: {}]
  %s1 = inlined_call_operand.hbm [shape: f32[544,128], index: 1, kind: input, shape index: {}]
  %s2 = inlined_call_operand.vmem [shape: f32[256,1], index: 2, kind: output, shape index: {}]
  %s3 = sld [smem:[#allocation0]]
  $region22: #{tpu_custom_call.1} parent=0
    _
  %s5 = ssub.s32 1, %s3
  %s6 = scalar_select 0, %s5, %s3
  $region1: #{tpu_custom_call.1} parent=0
    #allocation2 [shape = 'u8[278528]{0}', space=vmem, size = 0x44000, scoped, tag = 'input window, operand 1, single buffered']
    #allocation3 [shape = 's32[1]{0}', space=sflag, size = 0x4, scoped, tag = 'scoped memory for tpu_custom_call.1']
    %7 = vsyncpa [#allocation3], 0
    // Predicated region
    $region2: #{tpu_custom_call.1} parent=1 // pred_check
      _
    $region3: #{tpu_custom_call.1} parent=1 // pred_check_branch
      %9 = sbr.rel (0) target = $region5
    $region4: #{tpu_custom_call.1} parent=1 // pred_region
      _
    $region5: #{tpu_custom_call.1} parent=1 // pred_fallthru
      _
    // Predicated region
    $region6: #{tpu_custom_call.1} parent=1 // pred_check
      _
    $region7: #{tpu_custom_call.1} parent=1 // pred_check_branch
      %11 = sbr.rel (0) target = $region9
    $region8: #{tpu_custom_call.1} parent=1 // pred_region
      %s13 = ssub.s32 8704, 8704
      %14 = vsyncadd [#allocation3], %s13
      %s15 = sshll.u32 [#allocation2], 4
      %s16 = int_to_ptr.vmem [resolvable:$true] %s15
      %21 = dma.hbm_to_vmem [thread:$0]  %s1, 8704, %s16, [#allocation3], 128, 128, 8
    $region9: #{tpu_custom_call.1} parent=1 // pred_fallthru
      _
    // Predicated region
    $region10: #{tpu_custom_call.1} parent=1 // pred_check
      _
    $region11: #{tpu_custom_call.1} parent=1 // pred_check_branch
      %23 = sbr.rel (0) target = $region13
    $region12: #{tpu_custom_call.1} parent=1 // pred_region
      %24 = dma.done [#allocation3], 8704
    $region13: #{tpu_custom_call.1} parent=1 // pred_fallthru
      _
    %v25 = vld [vmem:[%s0] sm:$0xff]
    %v26 = vld [vmem:[%s0 + $0x8] sm:$0xff]
    %v27 = vld [vmem:[%s0 + $0x10] sm:$0xff]
    %v28 = vld [vmem:[%s0 + $0x18] sm:$0xff]
    %v29 = vld [vmem:[%s0 + $0x20] sm:$0xff]
    %v30 = vld [vmem:[%s0 + $0x28] sm:$0xff]
    %v31 = vld [vmem:[%s0 + $0x30] sm:$0xff]
    %v32 = vld [vmem:[%s0 + $0x38] sm:$0xff]
    %v33 = vld [vmem:[%s0 + $0x40] sm:$0xff]
    %v34 = vld [vmem:[%s0 + $0x48] sm:$0xff]
    %v35 = vld [vmem:[%s0 + $0x50] sm:$0xff]
    %v36 = vld [vmem:[%s0 + $0x58] sm:$0xff]
    %v37 = vld [vmem:[%s0 + $0x60] sm:$0xff]
    %v38 = vld [vmem:[%s0 + $0x68] sm:$0xff]
    %v39 = vld [vmem:[%s0 + $0x70] sm:$0xff]
    %v40 = vld [vmem:[%s0 + $0x78] sm:$0xff]
    %v41 = vld [vmem:[%s0 + $0x80] sm:$0xff]
    %v42 = vld [vmem:[%s0 + $0x88] sm:$0xff]
    %v43 = vld [vmem:[%s0 + $0x90] sm:$0xff]
    %v44 = vld [vmem:[%s0 + $0x98] sm:$0xff]
    %v45 = vld [vmem:[%s0 + $0xa0] sm:$0xff]
    %v46 = vld [vmem:[%s0 + $0xa8] sm:$0xff]
    %v47 = vld [vmem:[%s0 + $0xb0] sm:$0xff]
    %v48 = vld [vmem:[%s0 + $0xb8] sm:$0xff]
    %v49 = vld [vmem:[%s0 + $0xc0] sm:$0xff]
    %v50 = vld [vmem:[%s0 + $0xc8] sm:$0xff]
    %v51 = vld [vmem:[%s0 + $0xd0] sm:$0xff]
    %v52 = vld [vmem:[%s0 + $0xd8] sm:$0xff]
    %v53 = vld [vmem:[%s0 + $0xe0] sm:$0xff]
    %v54 = vld [vmem:[%s0 + $0xe8] sm:$0xff]
    %v55 = vld [vmem:[%s0 + $0xf0] sm:$0xff]
    %v56 = vld [vmem:[%s0 + $0xf8] sm:$0xff]
    %v57 = vld [vmem:[#allocation2] sm:$0xff]
    %v58 = vld [vmem:[#allocation2 + $0x8] sm:$0xff]
    %v59 = vld [vmem:[#allocation2 + $0x200] sm:$0x1]
    %v60 = vlaneseq
    %v61 = vshrl.u32 %v60, 7
    %v62 = vsub.s32 0, %v61
    %v63 = vrot.slane %v59, %v62
    %vm64 = vcmask 130048
    %v66 = vsel %vm64, %v25, 0
    %v69 = vsel %vm64, %v26, 0
    %v72 = vsel %vm64, %v27, 0
    %v75 = vsel %vm64, %v28, 0
    %v78 = vsel %vm64, %v29, 0
    %v81 = vsel %vm64, %v30, 0
    %v84 = vsel %vm64, %v31, 0
    %v87 = vsel %vm64, %v32, 0
    %v90 = vsel %vm64, %v33, 0
    %v93 = vsel %vm64, %v34, 0
    %v96 = vsel %vm64, %v35, 0
    %v99 = vsel %vm64, %v36, 0
    %v102 = vsel %vm64, %v37, 0
    %v105 = vsel %vm64, %v38, 0
    %v108 = vsel %vm64, %v39, 0
    %v111 = vsel %vm64, %v40, 0
    %v114 = vsel %vm64, %v41, 0
    %v117 = vsel %vm64, %v42, 0
    %v120 = vsel %vm64, %v43, 0
    %v123 = vsel %vm64, %v44, 0
    %v126 = vsel %vm64, %v45, 0
    %v129 = vsel %vm64, %v46, 0
    %v132 = vsel %vm64, %v47, 0
    %v135 = vsel %vm64, %v48, 0
    %v138 = vsel %vm64, %v49, 0
    %v141 = vsel %vm64, %v50, 0
    %v144 = vsel %vm64, %v51, 0
    %v147 = vsel %vm64, %v52, 0
    %v150 = vsel %vm64, %v53, 0
    %v153 = vsel %vm64, %v54, 0
    %v156 = vsel %vm64, %v55, 0
    %v159 = vsel %vm64, %v56, 0
    %161 = vmatprep.subr.mxu0 0.0
    %162 = vmatpush1.msra.mxu0 %v57
    %163 = vmatprep.subr.mxu0 0.0
    %164 = vmatpush1.msra.mxu0 %v58
    %165 = vmatprep.subr.mxu0 0.0
    %166 = vmatpush1.msra.mxu0 0.0
    %167 = vmatprep.subr.mxu0 0.0
    %168 = vmatpush1.msra.mxu0 0.0
    %169 = vmatprep.subr.mxu0 0.0
    %170 = vmatpush1.msra.mxu0 0.0
    %171 = vmatprep.subr.mxu0 0.0
    %172 = vmatpush1.msra.mxu0 0.0
    %173 = vmatprep.subr.mxu0 0.0
    %174 = vmatpush1.msra.mxu0 0.0
    %175 = vmatprep.subr.mxu0 0.0
    %176 = vmatpush1.msra.mxu0 0.0
    %177 = vmatprep.subr.mxu0 0.0
    %178 = vmatpush1.msra.mxu0 0.0
    %179 = vmatprep.subr.mxu0 0.0
    %180 = vmatpush1.msra.mxu0 0.0
    %181 = vmatprep.subr.mxu0 0.0
    %182 = vmatpush1.msra.mxu0 0.0
    %183 = vmatprep.subr.mxu0 0.0
    %184 = vmatpush1.msra.mxu0 0.0
    %185 = vmatprep.subr.mxu0 0.0
    %186 = vmatpush1.msra.mxu0 0.0
    %187 = vmatprep.subr.mxu0 0.0
    %188 = vmatpush1.msra.mxu0 0.0
    %189 = vmatprep.subr.mxu0 0.0
    %190 = vmatpush1.msra.mxu0 0.0
    %191 = vmatprep.subr.mxu0 0.0
    %192 = vmatpush1.msra.mxu0 0.0
    %193 = vmatprep.subr.mxu0 0.0
    %194 = vmatpush1.msra.mxu0 0.0
    %195 = vmatprep.subr.mxu0 0.0
    %196 = vmatpush1.msra.mxu0 0.0
    %197 = vmatprep.subr.mxu0 0.0
    %198 = vmatpush1.msra.mxu0 0.0
    %199 = vmatprep.subr.mxu0 0.0
    %200 = vmatpush1.msra.mxu0 0.0
    %201 = vmatprep.subr.mxu0 0.0
    %202 = vmatpush1.msra.mxu0 0.0
    %203 = vmatprep.subr.mxu0 0.0
    %204 = vmatpush1.msra.mxu0 0.0
    %205 = vmatprep.subr.mxu0 0.0
    %206 = vmatpush1.msra.mxu0 0.0
    %207 = vmatprep.subr.mxu0 0.0
    %208 = vmatpush1.msra.mxu0 0.0
    %209 = vmatprep.subr.mxu0 0.0
    %210 = vmatpush1.msra.mxu0 0.0
    %211 = vmatprep.subr.mxu0 0.0
    %212 = vmatpush1.msra.mxu0 0.0
    %213 = vmatprep.subr.mxu0 0.0
    %214 = vmatpush1.msra.mxu0 0.0
    %215 = vmatprep.subr.mxu0 0.0
    %216 = vmatpush1.msra.mxu0 0.0
    %217 = vmatprep.subr.mxu0 0.0
    %218 = vmatpush1.msra.mxu0 0.0
    %219 = vmatprep.subr.mxu0 0.0
    %220 = vmatpush1.msra.mxu0 0.0
    %221 = vmatprep.subr.mxu0 0.0
    %222 = vmatpush1.msra.mxu0 0.0
    %223 = vmatprep.subr.mxu0 0.0
    %224 = vmatpush1.msra.mxu0 0.0
    %225 = vmatprep.mubr.f32.mxu0 0.0
    %226 = vmatmul.mubr.f32.gmra.mrb[0].mxu0 %v66
    %v227 = vpop.f32.mrb[0].mxu0
    %v228 = vadd.f32 %v63, %v227
    %v229 = vpop.f32.mrb[0].mxu0
    %230 = vmatprep.mubr.f32.mxu0 0.0
    %231 = vmatmul.mubr.f32.gmra.mrb[0].mxu0 %v69
    %v232 = vpop.f32.mrb[0].mxu0
    %v233 = vadd.f32 %v63, %v232
    %v234 = vpop.f32.mrb[0].mxu0
    %235 = vmatprep.mubr.f32.mxu0 0.0
    %236 = vmatmul.mubr.f32.gmra.mrb[0].mxu0 %v72
    %v237 = vpop.f32.mrb[0].mxu0
    %v238 = vadd.f32 %v63, %v237
    %v239 = vpop.f32.mrb[0].mxu0
    %240 = vmatprep.mubr.f32.mxu0 0.0
    %241 = vmatmul.mubr.f32.gmra.mrb[0].mxu0 %v75
    %v242 = vpop.f32.mrb[0].mxu0
    %v243 = vadd.f32 %v63, %v242
    %v244 = vpop.f32.mrb[0].mxu0
    %245 = vmatprep.mubr.f32.mxu0 0.0
    %246 = vmatmul.mubr.f32.gmra.mrb[0].mxu0 %v78
    %v247 = vpop.f32.mrb[0].mxu0
    %v248 = vadd.f32 %v63, %v247
    %v249 = vpop.f32.mrb[0].mxu0
    %250 = vmatprep.mubr.f32.mxu0 0.0
    %251 = vmatmul.mubr.f32.gmra.mrb[0].mxu0 %v81
    %v252 = vpop.f32.mrb[0].mxu0
    %v253 = vadd.f32 %v63, %v252
    %v254 = vpop.f32.mrb[0].mxu0
    %255 = vmatprep.mubr.f32.mxu0 0.0
    %256 = vmatmul.mubr.f32.gmra.mrb[0].mxu0 %v84
    %v257 = vpop.f32.mrb[0].mxu0
    %v258 = vadd.f32 %v63, %v257
    %v259 = vpop.f32.mrb[0].mxu0
    %260 = vmatprep.mubr.f32.mxu0 0.0
    %261 = vmatmul.mubr.f32.gmra.mrb[0].mxu0 %v87
    %v262 = vpop.f32.mrb[0].mxu0
    %v263 = vadd.f32 %v63, %v262
    %v264 = vpop.f32.mrb[0].mxu0
    %265 = vmatprep.mubr.f32.mxu0 0.0
    %266 = vmatmul.mubr.f32.gmra.mrb[0].mxu0 %v90
    %v267 = vpop.f32.mrb[0].mxu0
    %v268 = vadd.f32 %v63, %v267
    %v269 = vpop.f32.mrb[0].mxu0
    %270 = vmatprep.mubr.f32.mxu0 0.0
    %271 = vmatmul.mubr.f32.gmra.mrb[0].mxu0 %v93
    %v272 = vpop.f32.mrb[0].mxu0
    %v273 = vadd.f32 %v63, %v272
    %v274 = vpop.f32.mrb[0].mxu0
    %275 = vmatprep.mubr.f32.mxu0 0.0
    %276 = vmatmul.mubr.f32.gmra.mrb[0].mxu0 %v96
    %v277 = vpop.f32.mrb[0].mxu0
    %v278 = vadd.f32 %v63, %v277
    %v279 = vpop.f32.mrb[0].mxu0
    %280 = vmatprep.mubr.f32.mxu0 0.0
    %281 = vmatmul.mubr.f32.gmra.mrb[0].mxu0 %v99
    %v282 = vpop.f32.mrb[0].mxu0
    %v283 = vadd.f32 %v63, %v282
    %v284 = vpop.f32.mrb[0].mxu0
    %285 = vmatprep.mubr.f32.mxu0 0.0
    %286 = vmatmul.mubr.f32.gmra.mrb[0].mxu0 %v102
    %v287 = vpop.f32.mrb[0].mxu0
    %v288 = vadd.f32 %v63, %v287
    %v289 = vpop.f32.mrb[0].mxu0
    %290 = vmatprep.mubr.f32.mxu0 0.0
    %291 = vmatmul.mubr.f32.gmra.mrb[0].mxu0 %v105
    %v292 = vpop.f32.mrb[0].mxu0
    %v293 = vadd.f32 %v63, %v292
    %v294 = vpop.f32.mrb[0].mxu0
    %295 = vmatprep.mubr.f32.mxu0 0.0
    %296 = vmatmul.mubr.f32.gmra.mrb[0].mxu0 %v108
    %v297 = vpop.f32.mrb[0].mxu0
    %v298 = vadd.f32 %v63, %v297
    %v299 = vpop.f32.mrb[0].mxu0
    %300 = vmatprep.mubr.f32.mxu0 0.0
    %301 = vmatmul.mubr.f32.gmra.mrb[0].mxu0 %v111
    %v302 = vpop.f32.mrb[0].mxu0
    %v303 = vadd.f32 %v63, %v302
    %v304 = vpop.f32.mrb[0].mxu0
    %305 = vmatprep.mubr.f32.mxu0 0.0
    %306 = vmatmul.mubr.f32.gmra.mrb[0].mxu0 %v114
    %v307 = vpop.f32.mrb[0].mxu0
    %v308 = vadd.f32 %v63, %v307
    %v309 = vpop.f32.mrb[0].mxu0
    %310 = vmatprep.mubr.f32.mxu0 0.0
    %311 = vmatmul.mubr.f32.gmra.mrb[0].mxu0 %v117
    %v312 = vpop.f32.mrb[0].mxu0
    %v313 = vadd.f32 %v63, %v312
    %v314 = vpop.f32.mrb[0].mxu0
    %315 = vmatprep.mubr.f32.mxu0 0.0
    %316 = vmatmul.mubr.f32.gmra.mrb[0].mxu0 %v120
    %v317 = vpop.f32.mrb[0].mxu0
    %v318 = vadd.f32 %v63, %v317
    %v319 = vpop.f32.mrb[0].mxu0
    %320 = vmatprep.mubr.f32.mxu0 0.0
    %321 = vmatmul.mubr.f32.gmra.mrb[0].mxu0 %v123
    %v322 = vpop.f32.mrb[0].mxu0
    %v323 = vadd.f32 %v63, %v322
    %v324 = vpop.f32.mrb[0].mxu0
    %325 = vmatprep.mubr.f32.mxu0 0.0
    %326 = vmatmul.mubr.f32.gmra.mrb[0].mxu0 %v126
    %v327 = vpop.f32.mrb[0].mxu0
    %v328 = vadd.f32 %v63, %v327
    %v329 = vpop.f32.mrb[0].mxu0
    %330 = vmatprep.mubr.f32.mxu0 0.0
    %331 = vmatmul.mubr.f32.gmra.mrb[0].mxu0 %v129
    %v332 = vpop.f32.mrb[0].mxu0
    %v333 = vadd.f32 %v63, %v332
    %v334 = vpop.f32.mrb[0].mxu0
    %335 = vmatprep.mubr.f32.mxu0 0.0
    %336 = vmatmul.mubr.f32.gmra.mrb[0].mxu0 %v132
    %v337 = vpop.f32.mrb[0].mxu0
    %v338 = vadd.f32 %v63, %v337
    %v339 = vpop.f32.mrb[0].mxu0
    %340 = vmatprep.mubr.f32.mxu0 0.0
    %341 = vmatmul.mubr.f32.gmra.mrb[0].mxu0 %v135
    %v342 = vpop.f32.mrb[0].mxu0
    %v343 = vadd.f32 %v63, %v342
    %v344 = vpop.f32.mrb[0].mxu0
    %345 = vmatprep.mubr.f32.mxu0 0.0
    %346 = vmatmul.mubr.f32.gmra.mrb[0].mxu0 %v138
    %v347 = vpop.f32.mrb[0].mxu0
    %v348 = vadd.f32 %v63, %v347
    %v349 = vpop.f32.mrb[0].mxu0
    %350 = vmatprep.mubr.f32.mxu0 0.0
    %351 = vmatmul.mubr.f32.gmra.mrb[0].mxu0 %v141
    %v352 = vpop.f32.mrb[0].mxu0
    %v353 = vadd.f32 %v63, %v352
    %v354 = vpop.f32.mrb[0].mxu0
    %355 = vmatprep.mubr.f32.mxu0 0.0
    %356 = vmatmul.mubr.f32.gmra.mrb[0].mxu0 %v144
    %v357 = vpop.f32.mrb[0].mxu0
    %v358 = vadd.f32 %v63, %v357
    %v359 = vpop.f32.mrb[0].mxu0
    %360 = vmatprep.mubr.f32.mxu0 0.0
    %361 = vmatmul.mubr.f32.gmra.mrb[0].mxu0 %v147
    %v362 = vpop.f32.mrb[0].mxu0
    %v363 = vadd.f32 %v63, %v362
    %v364 = vpop.f32.mrb[0].mxu0
    %365 = vmatprep.mubr.f32.mxu0 0.0
    %366 = vmatmul.mubr.f32.gmra.mrb[0].mxu0 %v150
    %v367 = vpop.f32.mrb[0].mxu0
    %v368 = vadd.f32 %v63, %v367
    %v369 = vpop.f32.mrb[0].mxu0
    %370 = vmatprep.mubr.f32.mxu0 0.0
    %371 = vmatmul.mubr.f32.gmra.mrb[0].mxu0 %v153
    %v372 = vpop.f32.mrb[0].mxu0
    %v373 = vadd.f32 %v63, %v372
    %v374 = vpop.f32.mrb[0].mxu0
    %375 = vmatprep.mubr.f32.mxu0 0.0
    %376 = vmatmul.mubr.f32.gmra.mrb[0].mxu0 %v156
    %v377 = vpop.f32.mrb[0].mxu0
    %v378 = vadd.f32 %v63, %v377
    %v379 = vpop.f32.mrb[0].mxu0
    %380 = vmatprep.mubr.f32.mxu0 0.0
    %381 = vmatmul.mubr.f32.gmra.mrb[0].mxu0 %v159
    %v382 = vpop.f32.mrb[0].mxu0
    %v383 = vadd.f32 %v63, %v382
    %v384 = vpop.f32.mrb[0].mxu0
    %385 = vdwg.mxu0
    %vm386 = vcmp.ge.f32.partialorder %v228, 0.0
    %vm387 = vcmp.ge.f32.partialorder %v233, 0.0
    %vm388 = vcmp.ge.f32.partialorder %v238, 0.0
    %vm389 = vcmp.ge.f32.partialorder %v243, 0.0
    %vm390 = vcmp.ge.f32.partialorder %v248, 0.0
    %vm391 = vcmp.ge.f32.partialorder %v253, 0.0
    %vm392 = vcmp.ge.f32.partialorder %v258, 0.0
    %vm393 = vcmp.ge.f32.partialorder %v263, 0.0
    %vm394 = vcmp.ge.f32.partialorder %v268, 0.0
    %vm395 = vcmp.ge.f32.partialorder %v273, 0.0
    %vm396 = vcmp.ge.f32.partialorder %v278, 0.0
    %vm397 = vcmp.ge.f32.partialorder %v283, 0.0
    %vm398 = vcmp.ge.f32.partialorder %v288, 0.0
    %vm399 = vcmp.ge.f32.partialorder %v293, 0.0
    %vm400 = vcmp.ge.f32.partialorder %v298, 0.0
    %vm401 = vcmp.ge.f32.partialorder %v303, 0.0
    %vm402 = vcmp.ge.f32.partialorder %v308, 0.0
    %vm403 = vcmp.ge.f32.partialorder %v313, 0.0
    %vm404 = vcmp.ge.f32.partialorder %v318, 0.0
    %vm405 = vcmp.ge.f32.partialorder %v323, 0.0
    %vm406 = vcmp.ge.f32.partialorder %v328, 0.0
    %vm407 = vcmp.ge.f32.partialorder %v333, 0.0
    %vm408 = vcmp.ge.f32.partialorder %v338, 0.0
    %vm409 = vcmp.ge.f32.partialorder %v343, 0.0
    %vm410 = vcmp.ge.f32.partialorder %v348, 0.0
    %vm411 = vcmp.ge.f32.partialorder %v353, 0.0
    %vm412 = vcmp.ge.f32.partialorder %v358, 0.0
    %vm413 = vcmp.ge.f32.partialorder %v363, 0.0
    %vm414 = vcmp.ge.f32.partialorder %v368, 0.0
    %vm415 = vcmp.ge.f32.partialorder %v373, 0.0
    %vm416 = vcmp.ge.f32.partialorder %v378, 0.0
    %vm417 = vcmp.ge.f32.partialorder %v383, 0.0
    %v418 = vmul.f32 %v228, 0.01
    %v419 = vmul.f32 %v233, 0.01
    %v420 = vmul.f32 %v238, 0.01
    %v421 = vmul.f32 %v243, 0.01
    %v422 = vmul.f32 %v248, 0.01
    %v423 = vmul.f32 %v253, 0.01
    %v424 = vmul.f32 %v258, 0.01
    %v425 = vmul.f32 %v263, 0.01
    %v426 = vmul.f32 %v268, 0.01
    %v427 = vmul.f32 %v273, 0.01
    %v428 = vmul.f32 %v278, 0.01
    %v429 = vmul.f32 %v283, 0.01
    %v430 = vmul.f32 %v288, 0.01
    %v431 = vmul.f32 %v293, 0.01
    %v432 = vmul.f32 %v298, 0.01
    %v433 = vmul.f32 %v303, 0.01
    %v434 = vmul.f32 %v308, 0.01
    %v435 = vmul.f32 %v313, 0.01
    %v436 = vmul.f32 %v318, 0.01
    %v437 = vmul.f32 %v323, 0.01
    %v438 = vmul.f32 %v328, 0.01
    %v439 = vmul.f32 %v333, 0.01
    %v440 = vmul.f32 %v338, 0.01
    %v441 = vmul.f32 %v343, 0.01
    %v442 = vmul.f32 %v348, 0.01
    %v443 = vmul.f32 %v353, 0.01
    %v444 = vmul.f32 %v358, 0.01
    %v445 = vmul.f32 %v363, 0.01
    %v446 = vmul.f32 %v368, 0.01
    %v447 = vmul.f32 %v373, 0.01
    %v448 = vmul.f32 %v378, 0.01
    %v449 = vmul.f32 %v383, 0.01
    %v450 = vsel %vm386, %v228, %v418
    %v451 = vsel %vm387, %v233, %v419
    %v452 = vsel %vm388, %v238, %v420
    %v453 = vsel %vm389, %v243, %v421
    %v454 = vsel %vm390, %v248, %v422
    %v455 = vsel %vm391, %v253, %v423
    %v456 = vsel %vm392, %v258, %v424
    %v457 = vsel %vm393, %v263, %v425
    %v458 = vsel %vm394, %v268, %v426
    %v459 = vsel %vm395, %v273, %v427
    %v460 = vsel %vm396, %v278, %v428
    %v461 = vsel %vm397, %v283, %v429
    %v462 = vsel %vm398, %v288, %v430
    %v463 = vsel %vm399, %v293, %v431
    %v464 = vsel %vm400, %v298, %v432
    %v465 = vsel %vm401, %v303, %v433
    %v466 = vsel %vm402, %v308, %v434
    %v467 = vsel %vm403, %v313, %v435
    %v468 = vsel %vm404, %v318, %v436
    %v469 = vsel %vm405, %v323, %v437
    %v470 = vsel %vm406, %v328, %v438
    %v471 = vsel %vm407, %v333, %v439
    %v472 = vsel %vm408, %v338, %v440
    %v473 = vsel %vm409, %v343, %v441
    %v474 = vsel %vm410, %v348, %v442
    %v475 = vsel %vm411, %v353, %v443
    %v476 = vsel %vm412, %v358, %v444
    %v477 = vsel %vm413, %v363, %v445
    %v478 = vsel %vm414, %v368, %v446
    %v479 = vsel %vm415, %v373, %v447
    %v480 = vsel %vm416, %v378, %v448
    %v481 = vsel %vm417, %v383, %v449
    %v482 = vld [vmem:[#allocation2 + $0x80] sm:$0xff]
    %v483 = vld [vmem:[#allocation2 + $0x88] sm:$0xff]
    %v484 = vld [vmem:[#allocation2 + $0x90] sm:$0xff]
    %v485 = vld [vmem:[#allocation2 + $0x98] sm:$0xff]
    %v486 = vld [vmem:[#allocation2 + $0xa0] sm:$0xff]
    %v487 = vld [vmem:[#allocation2 + $0xa8] sm:$0xff]
    %v488 = vld [vmem:[#allocation2 + $0xb0] sm:$0xff]
    %v489 = vld [vmem:[#allocation2 + $0xb8] sm:$0xff]
    %v490 = vld [vmem:[#allocation2 + $0xc0] sm:$0xff]
    %v491 = vld [vmem:[#allocation2 + $0xc8] sm:$0xff]
    %v492 = vld [vmem:[#allocation2 + $0xd0] sm:$0xff]
    %v493 = vld [vmem:[#allocation2 + $0xd8] sm:$0xff]
    %v494 = vld [vmem:[#allocation2 + $0xe0] sm:$0xff]
    %v495 = vld [vmem:[#allocation2 + $0xe8] sm:$0xff]
    %v496 = vld [vmem:[#allocation2 + $0xf0] sm:$0xff]
    %v497 = vld [vmem:[#allocation2 + $0xf8] sm:$0xff]
    %v498 = vld [vmem:[#allocation2 + $0x208] sm:$0x1]
    %v499 = vlaneseq
    %v500 = vshrl.u32 %v499, 7
    %v501 = vsub.s32 0, %v500
    %v502 = vrot.slane %v498, %v501
    %503 = vmatprep.subr.mxu0 0.0
    %504 = vmatpush1.msra.mxu0 %v482
    %505 = vmatprep.subr.mxu0 0.0
    %506 = vmatpush1.msra.mxu0 %v483
    %507 = vmatprep.subr.mxu0 0.0
    %508 = vmatpush1.msra.mxu0 %v484
    %509 = vmatprep.subr.mxu0 0.0
    %510 = vmatpush1.msra.mxu0 %v485
    %511 = vmatprep.subr.mxu0 0.0
    %512 = vmatpush1.msra.mxu0 %v486
    %513 = vmatprep.subr.mxu0 0.0
    %514 = vmatpush1.msra.mxu0 %v487
    %515 = vmatprep.subr.mxu0 0.0
    %516 = vmatpush1.msra.mxu0 %v488
    %517 = vmatprep.subr.mxu0 0.0
    %518 = vmatpush1.msra.mxu0 %v489
    %519 = vmatprep.subr.mxu0 0.0
    %520 = vmatpush1.msra.mxu0 %v490
    %521 = vmatprep.subr.mxu0 0.0
    %522 = vmatpush1.msra.mxu0 %v491
    %523 = vmatprep.subr.mxu0 0.0
    %524 = vmatpush1.msra.mxu0 %v492
    %525 = vmatprep.subr.mxu0 0.0
    %526 = vmatpush1.msra.mxu0 %v493
    %527 = vmatprep.subr.mxu0 0.0
    %528 = vmatpush1.msra.mxu0 %v494
    %529 = vmatprep.subr.mxu0 0.0
    %530 = vmatpush1.msra.mxu0 %v495
    %531 = vmatprep.subr.mxu0 0.0
    %532 = vmatpush1.msra.mxu0 %v496
    %533 = vmatprep.subr.mxu0 0.0
    %534 = vmatpush1.msra.mxu0 %v497
    %535 = vmatprep.subr.mxu0 0.0
    %536 = vmatpush1.msra.mxu0 0.0
    %537 = vmatprep.subr.mxu0 0.0
    %538 = vmatpush1.msra.mxu0 0.0
    %539 = vmatprep.subr.mxu0 0.0
    %540 = vmatpush1.msra.mxu0 0.0
    %541 = vmatprep.subr.mxu0 0.0
    %542 = vmatpush1.msra.mxu0 0.0
    %543 = vmatprep.subr.mxu0 0.0
    %544 = vmatpush1.msra.mxu0 0.0
    %545 = vmatprep.subr.mxu0 0.0
    %546 = vmatpush1.msra.mxu0 0.0
    %547 = vmatprep.subr.mxu0 0.0
    %548 = vmatpush1.msra.mxu0 0.0
    %549 = vmatprep.subr.mxu0 0.0
    %550 = vmatpush1.msra.mxu0 0.0
    %551 = vmatprep.subr.mxu0 0.0
    %552 = vmatpush1.msra.mxu0 0.0
    %553 = vmatprep.subr.mxu0 0.0
    %554 = vmatpush1.msra.mxu0 0.0
    %555 = vmatprep.subr.mxu0 0.0
    %556 = vmatpush1.msra.mxu0 0.0
    %557 = vmatprep.subr.mxu0 0.0
    %558 = vmatpush1.msra.mxu0 0.0
    %559 = vmatprep.subr.mxu0 0.0
    %560 = vmatpush1.msra.mxu0 0.0
    %561 = vmatprep.subr.mxu0 0.0
    %562 = vmatpush1.msra.mxu0 0.0
    %563 = vmatprep.subr.mxu0 0.0
    %564 = vmatpush1.msra.mxu0 0.0
    %565 = vmatprep.subr.mxu0 0.0
    %566 = vmatpush1.msra.mxu0 0.0
    %567 = vmatprep.mubr.f32.mxu0 0.0
    %568 = vmatmul.mubr.f32.gmra.mrb[0].mxu0 %v450
    %v569 = vpop.f32.mrb[0].mxu0
    %v570 = vadd.f32 %v502, %v569
    %v571 = vpop.f32.mrb[0].mxu0
    %572 = vmatprep.mubr.f32.mxu0 0.0
    %573 = vmatmul.mubr.f32.gmra.mrb[0].mxu0 %v451
    %v574 = vpop.f32.mrb[0].mxu0
    %v575 = vadd.f32 %v502, %v574
    %v576 = vpop.f32.mrb[0].mxu0
    %577 = vmatprep.mubr.f32.mxu0 0.0
    %578 = vmatmul.mubr.f32.gmra.mrb[0].mxu0 %v452
    %v579 = vpop.f32.mrb[0].mxu0
    %v580 = vadd.f32 %v502, %v579
    %v581 = vpop.f32.mrb[0].mxu0
    %582 = vmatprep.mubr.f32.mxu0 0.0
    %583 = vmatmul.mubr.f32.gmra.mrb[0].mxu0 %v453
    %v584 = vpop.f32.mrb[0].mxu0
    %v585 = vadd.f32 %v502, %v584
    %v586 = vpop.f32.mrb[0].mxu0
    %587 = vmatprep.mubr.f32.mxu0 0.0
    %588 = vmatmul.mubr.f32.gmra.mrb[0].mxu0 %v454
    %v589 = vpop.f32.mrb[0].mxu0
    %v590 = vadd.f32 %v502, %v589
    %v591 = vpop.f32.mrb[0].mxu0
    %592 = vmatprep.mubr.f32.mxu0 0.0
    %593 = vmatmul.mubr.f32.gmra.mrb[0].mxu0 %v455
    %v594 = vpop.f32.mrb[0].mxu0
    %v595 = vadd.f32 %v502, %v594
    %v596 = vpop.f32.mrb[0].mxu0
    %597 = vmatprep.mubr.f32.mxu0 0.0
    %598 = vmatmul.mubr.f32.gmra.mrb[0].mxu0 %v456
    %v599 = vpop.f32.mrb[0].mxu0
    %v600 = vadd.f32 %v502, %v599
    %v601 = vpop.f32.mrb[0].mxu0
    %602 = vmatprep.mubr.f32.mxu0 0.0
    %603 = vmatmul.mubr.f32.gmra.mrb[0].mxu0 %v457
    %v604 = vpop.f32.mrb[0].mxu0
    %v605 = vadd.f32 %v502, %v604
    %v606 = vpop.f32.mrb[0].mxu0
    %607 = vmatprep.mubr.f32.mxu0 0.0
    %608 = vmatmul.mubr.f32.gmra.mrb[0].mxu0 %v458
    %v609 = vpop.f32.mrb[0].mxu0
    %v610 = vadd.f32 %v502, %v609
    %v611 = vpop.f32.mrb[0].mxu0
    %612 = vmatprep.mubr.f32.mxu0 0.0
    %613 = vmatmul.mubr.f32.gmra.mrb[0].mxu0 %v459
    %v614 = vpop.f32.mrb[0].mxu0
    %v615 = vadd.f32 %v502, %v614
    %v616 = vpop.f32.mrb[0].mxu0
    %617 = vmatprep.mubr.f32.mxu0 0.0
    %618 = vmatmul.mubr.f32.gmra.mrb[0].mxu0 %v460
    %v619 = vpop.f32.mrb[0].mxu0
    %v620 = vadd.f32 %v502, %v619
    %v621 = vpop.f32.mrb[0].mxu0
    %622 = vmatprep.mubr.f32.mxu0 0.0
    %623 = vmatmul.mubr.f32.gmra.mrb[0].mxu0 %v461
    %v624 = vpop.f32.mrb[0].mxu0
    %v625 = vadd.f32 %v502, %v624
    %v626 = vpop.f32.mrb[0].mxu0
    %627 = vmatprep.mubr.f32.mxu0 0.0
    %628 = vmatmul.mubr.f32.gmra.mrb[0].mxu0 %v462
    %v629 = vpop.f32.mrb[0].mxu0
    %v630 = vadd.f32 %v502, %v629
    %v631 = vpop.f32.mrb[0].mxu0
    %632 = vmatprep.mubr.f32.mxu0 0.0
    %633 = vmatmul.mubr.f32.gmra.mrb[0].mxu0 %v463
    %v634 = vpop.f32.mrb[0].mxu0
    %v635 = vadd.f32 %v502, %v634
    %v636 = vpop.f32.mrb[0].mxu0
    %637 = vmatprep.mubr.f32.mxu0 0.0
    %638 = vmatmul.mubr.f32.gmra.mrb[0].mxu0 %v464
    %v639 = vpop.f32.mrb[0].mxu0
    %v640 = vadd.f32 %v502, %v639
    %v641 = vpop.f32.mrb[0].mxu0
    %642 = vmatprep.mubr.f32.mxu0 0.0
    %643 = vmatmul.mubr.f32.gmra.mrb[0].mxu0 %v465
    %v644 = vpop.f32.mrb[0].mxu0
    %v645 = vadd.f32 %v502, %v644
    %v646 = vpop.f32.mrb[0].mxu0
    %647 = vmatprep.mubr.f32.mxu0 0.0
    %648 = vmatmul.mubr.f32.gmra.mrb[0].mxu0 %v466
    %v649 = vpop.f32.mrb[0].mxu0
    %v650 = vadd.f32 %v502, %v649
    %v651 = vpop.f32.mrb[0].mxu0
    %652 = vmatprep.mubr.f32.mxu0 0.0
    %653 = vmatmul.mubr.f32.gmra.mrb[0].mxu0 %v467
    %v654 = vpop.f32.mrb[0].mxu0
    %v655 = vadd.f32 %v502, %v654
    %v656 = vpop.f32.mrb[0].mxu0
    %657 = vmatprep.mubr.f32.mxu0 0.0
    %658 = vmatmul.mubr.f32.gmra.mrb[0].mxu0 %v468
    %v659 = vpop.f32.mrb[0].mxu0
    %v660 = vadd.f32 %v502, %v659
    %v661 = vpop.f32.mrb[0].mxu0
    %662 = vmatprep.mubr.f32.mxu0 0.0
    %663 = vmatmul.mubr.f32.gmra.mrb[0].mxu0 %v469
    %v664 = vpop.f32.mrb[0].mxu0
    %v665 = vadd.f32 %v502, %v664
    %v666 = vpop.f32.mrb[0].mxu0
    %667 = vmatprep.mubr.f32.mxu0 0.0
    %668 = vmatmul.mubr.f32.gmra.mrb[0].mxu0 %v470
    %v669 = vpop.f32.mrb[0].mxu0
    %v670 = vadd.f32 %v502, %v669
    %v671 = vpop.f32.mrb[0].mxu0
    %672 = vmatprep.mubr.f32.mxu0 0.0
    %673 = vmatmul.mubr.f32.gmra.mrb[0].mxu0 %v471
    %v674 = vpop.f32.mrb[0].mxu0
    %v675 = vadd.f32 %v502, %v674
    %v676 = vpop.f32.mrb[0].mxu0
    %677 = vmatprep.mubr.f32.mxu0 0.0
    %678 = vmatmul.mubr.f32.gmra.mrb[0].mxu0 %v472
    %v679 = vpop.f32.mrb[0].mxu0
    %v680 = vadd.f32 %v502, %v679
    %v681 = vpop.f32.mrb[0].mxu0
    %682 = vmatprep.mubr.f32.mxu0 0.0
    %683 = vmatmul.mubr.f32.gmra.mrb[0].mxu0 %v473
    %v684 = vpop.f32.mrb[0].mxu0
    %v685 = vadd.f32 %v502, %v684
    %v686 = vpop.f32.mrb[0].mxu0
    %687 = vmatprep.mubr.f32.mxu0 0.0
    %688 = vmatmul.mubr.f32.gmra.mrb[0].mxu0 %v474
    %v689 = vpop.f32.mrb[0].mxu0
    %v690 = vadd.f32 %v502, %v689
    %v691 = vpop.f32.mrb[0].mxu0
    %692 = vmatprep.mubr.f32.mxu0 0.0
    %693 = vmatmul.mubr.f32.gmra.mrb[0].mxu0 %v475
    %v694 = vpop.f32.mrb[0].mxu0
    %v695 = vadd.f32 %v502, %v694
    %v696 = vpop.f32.mrb[0].mxu0
    %697 = vmatprep.mubr.f32.mxu0 0.0
    %698 = vmatmul.mubr.f32.gmra.mrb[0].mxu0 %v476
    %v699 = vpop.f32.mrb[0].mxu0
    %v700 = vadd.f32 %v502, %v699
    %v701 = vpop.f32.mrb[0].mxu0
    %702 = vmatprep.mubr.f32.mxu0 0.0
    %703 = vmatmul.mubr.f32.gmra.mrb[0].mxu0 %v477
    %v704 = vpop.f32.mrb[0].mxu0
    %v705 = vadd.f32 %v502, %v704
    %v706 = vpop.f32.mrb[0].mxu0
    %707 = vmatprep.mubr.f32.mxu0 0.0
    %708 = vmatmul.mubr.f32.gmra.mrb[0].mxu0 %v478
    %v709 = vpop.f32.mrb[0].mxu0
    %v710 = vadd.f32 %v502, %v709
    %v711 = vpop.f32.mrb[0].mxu0
    %712 = vmatprep.mubr.f32.mxu0 0.0
    %713 = vmatmul.mubr.f32.gmra.mrb[0].mxu0 %v479
    %v714 = vpop.f32.mrb[0].mxu0
    %v715 = vadd.f32 %v502, %v714
    %v716 = vpop.f32.mrb[0].mxu0
    %717 = vmatprep.mubr.f32.mxu0 0.0
    %718 = vmatmul.mubr.f32.gmra.mrb[0].mxu0 %v480
    %v719 = vpop.f32.mrb[0].mxu0
    %v720 = vadd.f32 %v502, %v719
    %v721 = vpop.f32.mrb[0].mxu0
    %722 = vmatprep.mubr.f32.mxu0 0.0
    %723 = vmatmul.mubr.f32.gmra.mrb[0].mxu0 %v481
    %v724 = vpop.f32.mrb[0].mxu0
    %v725 = vadd.f32 %v502, %v724
    %v726 = vpop.f32.mrb[0].mxu0
    %727 = vdwg.mxu0
    %vm728 = vcmp.ge.f32.partialorder %v570, 0.0
    %vm729 = vcmp.ge.f32.partialorder %v575, 0.0
    %vm730 = vcmp.ge.f32.partialorder %v580, 0.0
    %vm731 = vcmp.ge.f32.partialorder %v585, 0.0
    %vm732 = vcmp.ge.f32.partialorder %v590, 0.0
    %vm733 = vcmp.ge.f32.partialorder %v595, 0.0
    %vm734 = vcmp.ge.f32.partialorder %v600, 0.0
    %vm735 = vcmp.ge.f32.partialorder %v605, 0.0
    %vm736 = vcmp.ge.f32.partialorder %v610, 0.0
    %vm737 = vcmp.ge.f32.partialorder %v615, 0.0
    %vm738 = vcmp.ge.f32.partialorder %v620, 0.0
    %vm739 = vcmp.ge.f32.partialorder %v625, 0.0
    %vm740 = vcmp.ge.f32.partialorder %v630, 0.0
    %vm741 = vcmp.ge.f32.partialorder %v635, 0.0
    %vm742 = vcmp.ge.f32.partialorder %v640, 0.0
    %vm743 = vcmp.ge.f32.partialorder %v645, 0.0
    %vm744 = vcmp.ge.f32.partialorder %v650, 0.0
    %vm745 = vcmp.ge.f32.partialorder %v655, 0.0
    %vm746 = vcmp.ge.f32.partialorder %v660, 0.0
    %vm747 = vcmp.ge.f32.partialorder %v665, 0.0
    %vm748 = vcmp.ge.f32.partialorder %v670, 0.0
    %vm749 = vcmp.ge.f32.partialorder %v675, 0.0
    %vm750 = vcmp.ge.f32.partialorder %v680, 0.0
    %vm751 = vcmp.ge.f32.partialorder %v685, 0.0
    %vm752 = vcmp.ge.f32.partialorder %v690, 0.0
    %vm753 = vcmp.ge.f32.partialorder %v695, 0.0
    %vm754 = vcmp.ge.f32.partialorder %v700, 0.0
    %vm755 = vcmp.ge.f32.partialorder %v705, 0.0
    %vm756 = vcmp.ge.f32.partialorder %v710, 0.0
    %vm757 = vcmp.ge.f32.partialorder %v715, 0.0
    %vm758 = vcmp.ge.f32.partialorder %v720, 0.0
    %vm759 = vcmp.ge.f32.partialorder %v725, 0.0
    %v760 = vmul.f32 %v570, 0.01
    %v761 = vmul.f32 %v575, 0.01
    %v762 = vmul.f32 %v580, 0.01
    %v763 = vmul.f32 %v585, 0.01
    %v764 = vmul.f32 %v590, 0.01
    %v765 = vmul.f32 %v595, 0.01
    %v766 = vmul.f32 %v600, 0.01
    %v767 = vmul.f32 %v605, 0.01
    %v768 = vmul.f32 %v610, 0.01
    %v769 = vmul.f32 %v615, 0.01
    %v770 = vmul.f32 %v620, 0.01
    %v771 = vmul.f32 %v625, 0.01
    %v772 = vmul.f32 %v630, 0.01
    %v773 = vmul.f32 %v635, 0.01
    %v774 = vmul.f32 %v640, 0.01
    %v775 = vmul.f32 %v645, 0.01
    %v776 = vmul.f32 %v650, 0.01
    %v777 = vmul.f32 %v655, 0.01
    %v778 = vmul.f32 %v660, 0.01
    %v779 = vmul.f32 %v665, 0.01
    %v780 = vmul.f32 %v670, 0.01
    %v781 = vmul.f32 %v675, 0.01
    %v782 = vmul.f32 %v680, 0.01
    %v783 = vmul.f32 %v685, 0.01
    %v784 = vmul.f32 %v690, 0.01
    %v785 = vmul.f32 %v695, 0.01
    %v786 = vmul.f32 %v700, 0.01
    %v787 = vmul.f32 %v705, 0.01
    %v788 = vmul.f32 %v710, 0.01
    %v789 = vmul.f32 %v715, 0.01
    %v790 = vmul.f32 %v720, 0.01
    %v791 = vmul.f32 %v725, 0.01
    %v792 = vsel %vm728, %v570, %v760
    %v793 = vsel %vm729, %v575, %v761
    %v794 = vsel %vm730, %v580, %v762
    %v795 = vsel %vm731, %v585, %v763
    %v796 = vsel %vm732, %v590, %v764
    %v797 = vsel %vm733, %v595, %v765
    %v798 = vsel %vm734, %v600, %v766
    %v799 = vsel %vm735, %v605, %v767
    %v800 = vsel %vm736, %v610, %v768
    %v801 = vsel %vm737, %v615, %v769
    %v802 = vsel %vm738, %v620, %v770
    %v803 = vsel %vm739, %v625, %v771
    %v804 = vsel %vm740, %v630, %v772
    %v805 = vsel %vm741, %v635, %v773
    %v806 = vsel %vm742, %v640, %v774
    %v807 = vsel %vm743, %v645, %v775
    %v808 = vsel %vm744, %v650, %v776
    %v809 = vsel %vm745, %v655, %v777
    %v810 = vsel %vm746, %v660, %v778
    %v811 = vsel %vm747, %v665, %v779
    %v812 = vsel %vm748, %v670, %v780
    %v813 = vsel %vm749, %v675, %v781
    %v814 = vsel %vm750, %v680, %v782
    %v815 = vsel %vm751, %v685, %v783
    %v816 = vsel %vm752, %v690, %v784
    %v817 = vsel %vm753, %v695, %v785
    %v818 = vsel %vm754, %v700, %v786
    %v819 = vsel %vm755, %v705, %v787
    %v820 = vsel %vm756, %v710, %v788
    %v821 = vsel %vm757, %v715, %v789
    %v822 = vsel %vm758, %v720, %v790
    %v823 = vsel %vm759, %v725, %v791
    %v824 = vld [vmem:[#allocation2 + $0x100] sm:$0xff]
    %v825 = vld [vmem:[#allocation2 + $0x108] sm:$0xff]
    %v826 = vld [vmem:[#allocation2 + $0x110] sm:$0xff]
    %v827 = vld [vmem:[#allocation2 + $0x118] sm:$0xff]
    %v828 = vld [vmem:[#allocation2 + $0x120] sm:$0xff]
    %v829 = vld [vmem:[#allocation2 + $0x128] sm:$0xff]
    %v830 = vld [vmem:[#allocation2 + $0x130] sm:$0xff]
    %v831 = vld [vmem:[#allocation2 + $0x138] sm:$0xff]
    %v832 = vld [vmem:[#allocation2 + $0x140] sm:$0xff]
    %v833 = vld [vmem:[#allocation2 + $0x148] sm:$0xff]
    %v834 = vld [vmem:[#allocation2 + $0x150] sm:$0xff]
    %v835 = vld [vmem:[#allocation2 + $0x158] sm:$0xff]
    %v836 = vld [vmem:[#allocation2 + $0x160] sm:$0xff]
    %v837 = vld [vmem:[#allocation2 + $0x168] sm:$0xff]
    %v838 = vld [vmem:[#allocation2 + $0x170] sm:$0xff]
    %v839 = vld [vmem:[#allocation2 + $0x178] sm:$0xff]
    %v840 = vld [vmem:[#allocation2 + $0x210] sm:$0x1]
    %v841 = vlaneseq
    %v842 = vshrl.u32 %v841, 7
    %v843 = vsub.s32 0, %v842
    %v844 = vrot.slane %v840, %v843
    %845 = vmatprep.subr.mxu0 0.0
    %846 = vmatpush1.msra.mxu0 %v824
    %847 = vmatprep.subr.mxu0 0.0
    %848 = vmatpush1.msra.mxu0 %v825
    %849 = vmatprep.subr.mxu0 0.0
    %850 = vmatpush1.msra.mxu0 %v826
    %851 = vmatprep.subr.mxu0 0.0
    %852 = vmatpush1.msra.mxu0 %v827
    %853 = vmatprep.subr.mxu0 0.0
    %854 = vmatpush1.msra.mxu0 %v828
    %855 = vmatprep.subr.mxu0 0.0
    %856 = vmatpush1.msra.mxu0 %v829
    %857 = vmatprep.subr.mxu0 0.0
    %858 = vmatpush1.msra.mxu0 %v830
    %859 = vmatprep.subr.mxu0 0.0
    %860 = vmatpush1.msra.mxu0 %v831
    %861 = vmatprep.subr.mxu0 0.0
    %862 = vmatpush1.msra.mxu0 %v832
    %863 = vmatprep.subr.mxu0 0.0
    %864 = vmatpush1.msra.mxu0 %v833
    %865 = vmatprep.subr.mxu0 0.0
    %866 = vmatpush1.msra.mxu0 %v834
    %867 = vmatprep.subr.mxu0 0.0
    %868 = vmatpush1.msra.mxu0 %v835
    %869 = vmatprep.subr.mxu0 0.0
    %870 = vmatpush1.msra.mxu0 %v836
    %871 = vmatprep.subr.mxu0 0.0
    %872 = vmatpush1.msra.mxu0 %v837
    %873 = vmatprep.subr.mxu0 0.0
    %874 = vmatpush1.msra.mxu0 %v838
    %875 = vmatprep.subr.mxu0 0.0
    %876 = vmatpush1.msra.mxu0 %v839
    %877 = vmatprep.subr.mxu0 0.0
    %878 = vmatpush1.msra.mxu0 0.0
    %879 = vmatprep.subr.mxu0 0.0
    %880 = vmatpush1.msra.mxu0 0.0
    %881 = vmatprep.subr.mxu0 0.0
    %882 = vmatpush1.msra.mxu0 0.0
    %883 = vmatprep.subr.mxu0 0.0
    %884 = vmatpush1.msra.mxu0 0.0
    %885 = vmatprep.subr.mxu0 0.0
    %886 = vmatpush1.msra.mxu0 0.0
    %887 = vmatprep.subr.mxu0 0.0
    %888 = vmatpush1.msra.mxu0 0.0
    %889 = vmatprep.subr.mxu0 0.0
    %890 = vmatpush1.msra.mxu0 0.0
    %891 = vmatprep.subr.mxu0 0.0
    %892 = vmatpush1.msra.mxu0 0.0
    %893 = vmatprep.subr.mxu0 0.0
    %894 = vmatpush1.msra.mxu0 0.0
    %895 = vmatprep.subr.mxu0 0.0
    %896 = vmatpush1.msra.mxu0 0.0
    %897 = vmatprep.subr.mxu0 0.0
    %898 = vmatpush1.msra.mxu0 0.0
    %899 = vmatprep.subr.mxu0 0.0
    %900 = vmatpush1.msra.mxu0 0.0
    %901 = vmatprep.subr.mxu0 0.0
    %902 = vmatpush1.msra.mxu0 0.0
    %903 = vmatprep.subr.mxu0 0.0
    %904 = vmatpush1.msra.mxu0 0.0
    %905 = vmatprep.subr.mxu0 0.0
    %906 = vmatpush1.msra.mxu0 0.0
    %907 = vmatprep.subr.mxu0 0.0
    %908 = vmatpush1.msra.mxu0 0.0
    %909 = vmatprep.mubr.f32.mxu0 0.0
    %910 = vmatmul.mubr.f32.gmra.mrb[0].mxu0 %v792
    %v911 = vpop.f32.mrb[0].mxu0
    %v912 = vadd.f32 %v844, %v911
    %v913 = vpop.f32.mrb[0].mxu0
    %914 = vmatprep.mubr.f32.mxu0 0.0
    %915 = vmatmul.mubr.f32.gmra.mrb[0].mxu0 %v793
    %v916 = vpop.f32.mrb[0].mxu0
    %v917 = vadd.f32 %v844, %v916
    %v918 = vpop.f32.mrb[0].mxu0
    %919 = vmatprep.mubr.f32.mxu0 0.0
    %920 = vmatmul.mubr.f32.gmra.mrb[0].mxu0 %v794
    %v921 = vpop.f32.mrb[0].mxu0
    %v922 = vadd.f32 %v844, %v921
    %v923 = vpop.f32.mrb[0].mxu0
    %924 = vmatprep.mubr.f32.mxu0 0.0
    %925 = vmatmul.mubr.f32.gmra.mrb[0].mxu0 %v795
    %v926 = vpop.f32.mrb[0].mxu0
    %v927 = vadd.f32 %v844, %v926
    %v928 = vpop.f32.mrb[0].mxu0
    %929 = vmatprep.mubr.f32.mxu0 0.0
    %930 = vmatmul.mubr.f32.gmra.mrb[0].mxu0 %v796
    %v931 = vpop.f32.mrb[0].mxu0
    %v932 = vadd.f32 %v844, %v931
    %v933 = vpop.f32.mrb[0].mxu0
    %934 = vmatprep.mubr.f32.mxu0 0.0
    %935 = vmatmul.mubr.f32.gmra.mrb[0].mxu0 %v797
    %v936 = vpop.f32.mrb[0].mxu0
    %v937 = vadd.f32 %v844, %v936
    %v938 = vpop.f32.mrb[0].mxu0
    %939 = vmatprep.mubr.f32.mxu0 0.0
    %940 = vmatmul.mubr.f32.gmra.mrb[0].mxu0 %v798
    %v941 = vpop.f32.mrb[0].mxu0
    %v942 = vadd.f32 %v844, %v941
    %v943 = vpop.f32.mrb[0].mxu0
    %944 = vmatprep.mubr.f32.mxu0 0.0
    %945 = vmatmul.mubr.f32.gmra.mrb[0].mxu0 %v799
    %v946 = vpop.f32.mrb[0].mxu0
    %v947 = vadd.f32 %v844, %v946
    %v948 = vpop.f32.mrb[0].mxu0
    %949 = vmatprep.mubr.f32.mxu0 0.0
    %950 = vmatmul.mubr.f32.gmra.mrb[0].mxu0 %v800
    %v951 = vpop.f32.mrb[0].mxu0
    %v952 = vadd.f32 %v844, %v951
    %v953 = vpop.f32.mrb[0].mxu0
    %954 = vmatprep.mubr.f32.mxu0 0.0
    %955 = vmatmul.mubr.f32.gmra.mrb[0].mxu0 %v801
    %v956 = vpop.f32.mrb[0].mxu0
    %v957 = vadd.f32 %v844, %v956
    %v958 = vpop.f32.mrb[0].mxu0
    %959 = vmatprep.mubr.f32.mxu0 0.0
    %960 = vmatmul.mubr.f32.gmra.mrb[0].mxu0 %v802
    %v961 = vpop.f32.mrb[0].mxu0
    %v962 = vadd.f32 %v844, %v961
    %v963 = vpop.f32.mrb[0].mxu0
    %964 = vmatprep.mubr.f32.mxu0 0.0
    %965 = vmatmul.mubr.f32.gmra.mrb[0].mxu0 %v803
    %v966 = vpop.f32.mrb[0].mxu0
    %v967 = vadd.f32 %v844, %v966
    %v968 = vpop.f32.mrb[0].mxu0
    %969 = vmatprep.mubr.f32.mxu0 0.0
    %970 = vmatmul.mubr.f32.gmra.mrb[0].mxu0 %v804
    %v971 = vpop.f32.mrb[0].mxu0
    %v972 = vadd.f32 %v844, %v971
    %v973 = vpop.f32.mrb[0].mxu0
    %974 = vmatprep.mubr.f32.mxu0 0.0
    %975 = vmatmul.mubr.f32.gmra.mrb[0].mxu0 %v805
    %v976 = vpop.f32.mrb[0].mxu0
    %v977 = vadd.f32 %v844, %v976
    %v978 = vpop.f32.mrb[0].mxu0
    %979 = vmatprep.mubr.f32.mxu0 0.0
    %980 = vmatmul.mubr.f32.gmra.mrb[0].mxu0 %v806
    %v981 = vpop.f32.mrb[0].mxu0
    %v982 = vadd.f32 %v844, %v981
    %v983 = vpop.f32.mrb[0].mxu0
    %984 = vmatprep.mubr.f32.mxu0 0.0
    %985 = vmatmul.mubr.f32.gmra.mrb[0].mxu0 %v807
    %v986 = vpop.f32.mrb[0].mxu0
    %v987 = vadd.f32 %v844, %v986
    %v988 = vpop.f32.mrb[0].mxu0
    %989 = vmatprep.mubr.f32.mxu0 0.0
    %990 = vmatmul.mubr.f32.gmra.mrb[0].mxu0 %v808
    %v991 = vpop.f32.mrb[0].mxu0
    %v992 = vadd.f32 %v844, %v991
    %v993 = vpop.f32.mrb[0].mxu0
    %994 = vmatprep.mubr.f32.mxu0 0.0
    %995 = vmatmul.mubr.f32.gmra.mrb[0].mxu0 %v809
    %v996 = vpop.f32.mrb[0].mxu0
    %v997 = vadd.f32 %v844, %v996
    %v998 = vpop.f32.mrb[0].mxu0
    %999 = vmatprep.mubr.f32.mxu0 0.0
    %1000 = vmatmul.mubr.f32.gmra.mrb[0].mxu0 %v810
    %v1001 = vpop.f32.mrb[0].mxu0
    %v1002 = vadd.f32 %v844, %v1001
    %v1003 = vpop.f32.mrb[0].mxu0
    %1004 = vmatprep.mubr.f32.mxu0 0.0
    %1005 = vmatmul.mubr.f32.gmra.mrb[0].mxu0 %v811
    %v1006 = vpop.f32.mrb[0].mxu0
    %v1007 = vadd.f32 %v844, %v1006
    %v1008 = vpop.f32.mrb[0].mxu0
    %1009 = vmatprep.mubr.f32.mxu0 0.0
    %1010 = vmatmul.mubr.f32.gmra.mrb[0].mxu0 %v812
    %v1011 = vpop.f32.mrb[0].mxu0
    %v1012 = vadd.f32 %v844, %v1011
    %v1013 = vpop.f32.mrb[0].mxu0
    %1014 = vmatprep.mubr.f32.mxu0 0.0
    %1015 = vmatmul.mubr.f32.gmra.mrb[0].mxu0 %v813
    %v1016 = vpop.f32.mrb[0].mxu0
    %v1017 = vadd.f32 %v844, %v1016
    %v1018 = vpop.f32.mrb[0].mxu0
    %1019 = vmatprep.mubr.f32.mxu0 0.0
    %1020 = vmatmul.mubr.f32.gmra.mrb[0].mxu0 %v814
    %v1021 = vpop.f32.mrb[0].mxu0
    %v1022 = vadd.f32 %v844, %v1021
    %v1023 = vpop.f32.mrb[0].mxu0
    %1024 = vmatprep.mubr.f32.mxu0 0.0
    %1025 = vmatmul.mubr.f32.gmra.mrb[0].mxu0 %v815
    %v1026 = vpop.f32.mrb[0].mxu0
    %v1027 = vadd.f32 %v844, %v1026
    %v1028 = vpop.f32.mrb[0].mxu0
    %1029 = vmatprep.mubr.f32.mxu0 0.0
    %1030 = vmatmul.mubr.f32.gmra.mrb[0].mxu0 %v816
    %v1031 = vpop.f32.mrb[0].mxu0
    %v1032 = vadd.f32 %v844, %v1031
    %v1033 = vpop.f32.mrb[0].mxu0
    %1034 = vmatprep.mubr.f32.mxu0 0.0
    %1035 = vmatmul.mubr.f32.gmra.mrb[0].mxu0 %v817
    %v1036 = vpop.f32.mrb[0].mxu0
    %v1037 = vadd.f32 %v844, %v1036
    %v1038 = vpop.f32.mrb[0].mxu0
    %1039 = vmatprep.mubr.f32.mxu0 0.0
    %1040 = vmatmul.mubr.f32.gmra.mrb[0].mxu0 %v818
    %v1041 = vpop.f32.mrb[0].mxu0
    %v1042 = vadd.f32 %v844, %v1041
    %v1043 = vpop.f32.mrb[0].mxu0
    %1044 = vmatprep.mubr.f32.mxu0 0.0
    %1045 = vmatmul.mubr.f32.gmra.mrb[0].mxu0 %v819
    %v1046 = vpop.f32.mrb[0].mxu0
    %v1047 = vadd.f32 %v844, %v1046
    %v1048 = vpop.f32.mrb[0].mxu0
    %1049 = vmatprep.mubr.f32.mxu0 0.0
    %1050 = vmatmul.mubr.f32.gmra.mrb[0].mxu0 %v820
    %v1051 = vpop.f32.mrb[0].mxu0
    %v1052 = vadd.f32 %v844, %v1051
    %v1053 = vpop.f32.mrb[0].mxu0
    %1054 = vmatprep.mubr.f32.mxu0 0.0
    %1055 = vmatmul.mubr.f32.gmra.mrb[0].mxu0 %v821
    %v1056 = vpop.f32.mrb[0].mxu0
    %v1057 = vadd.f32 %v844, %v1056
    %v1058 = vpop.f32.mrb[0].mxu0
    %1059 = vmatprep.mubr.f32.mxu0 0.0
    %1060 = vmatmul.mubr.f32.gmra.mrb[0].mxu0 %v822
    %v1061 = vpop.f32.mrb[0].mxu0
    %v1062 = vadd.f32 %v844, %v1061
    %v1063 = vpop.f32.mrb[0].mxu0
    %1064 = vmatprep.mubr.f32.mxu0 0.0
    %1065 = vmatmul.mubr.f32.gmra.mrb[0].mxu0 %v823
    %v1066 = vpop.f32.mrb[0].mxu0
    %v1067 = vadd.f32 %v844, %v1066
    %v1068 = vpop.f32.mrb[0].mxu0
    %1069 = vdwg.mxu0
    %vm1070 = vcmp.ge.f32.partialorder %v912, 0.0
    %vm1071 = vcmp.ge.f32.partialorder %v917, 0.0
    %vm1072 = vcmp.ge.f32.partialorder %v922, 0.0
    %vm1073 = vcmp.ge.f32.partialorder %v927, 0.0
    %vm1074 = vcmp.ge.f32.partialorder %v932, 0.0
    %vm1075 = vcmp.ge.f32.partialorder %v937, 0.0
    %vm1076 = vcmp.ge.f32.partialorder %v942, 0.0
    %vm1077 = vcmp.ge.f32.partialorder %v947, 0.0
    %vm1078 = vcmp.ge.f32.partialorder %v952, 0.0
    %vm1079 = vcmp.ge.f32.partialorder %v957, 0.0
    %vm1080 = vcmp.ge.f32.partialorder %v962, 0.0
    %vm1081 = vcmp.ge.f32.partialorder %v967, 0.0
    %vm1082 = vcmp.ge.f32.partialorder %v972, 0.0
    %vm1083 = vcmp.ge.f32.partialorder %v977, 0.0
    %vm1084 = vcmp.ge.f32.partialorder %v982, 0.0
    %vm1085 = vcmp.ge.f32.partialorder %v987, 0.0
    %vm1086 = vcmp.ge.f32.partialorder %v992, 0.0
    %vm1087 = vcmp.ge.f32.partialorder %v997, 0.0
    %vm1088 = vcmp.ge.f32.partialorder %v1002, 0.0
    %vm1089 = vcmp.ge.f32.partialorder %v1007, 0.0
    %vm1090 = vcmp.ge.f32.partialorder %v1012, 0.0
    %vm1091 = vcmp.ge.f32.partialorder %v1017, 0.0
    %vm1092 = vcmp.ge.f32.partialorder %v1022, 0.0
    %vm1093 = vcmp.ge.f32.partialorder %v1027, 0.0
    %vm1094 = vcmp.ge.f32.partialorder %v1032, 0.0
    %vm1095 = vcmp.ge.f32.partialorder %v1037, 0.0
    %vm1096 = vcmp.ge.f32.partialorder %v1042, 0.0
    %vm1097 = vcmp.ge.f32.partialorder %v1047, 0.0
    %vm1098 = vcmp.ge.f32.partialorder %v1052, 0.0
    %vm1099 = vcmp.ge.f32.partialorder %v1057, 0.0
    %vm1100 = vcmp.ge.f32.partialorder %v1062, 0.0
    %vm1101 = vcmp.ge.f32.partialorder %v1067, 0.0
    %v1102 = vmul.f32 %v912, 0.01
    %v1103 = vmul.f32 %v917, 0.01
    %v1104 = vmul.f32 %v922, 0.01
    %v1105 = vmul.f32 %v927, 0.01
    %v1106 = vmul.f32 %v932, 0.01
    %v1107 = vmul.f32 %v937, 0.01
    %v1108 = vmul.f32 %v942, 0.01
    %v1109 = vmul.f32 %v947, 0.01
    %v1110 = vmul.f32 %v952, 0.01
    %v1111 = vmul.f32 %v957, 0.01
    %v1112 = vmul.f32 %v962, 0.01
    %v1113 = vmul.f32 %v967, 0.01
    %v1114 = vmul.f32 %v972, 0.01
    %v1115 = vmul.f32 %v977, 0.01
    %v1116 = vmul.f32 %v982, 0.01
    %v1117 = vmul.f32 %v987, 0.01
    %v1118 = vmul.f32 %v992, 0.01
    %v1119 = vmul.f32 %v997, 0.01
    %v1120 = vmul.f32 %v1002, 0.01
    %v1121 = vmul.f32 %v1007, 0.01
    %v1122 = vmul.f32 %v1012, 0.01
    %v1123 = vmul.f32 %v1017, 0.01
    %v1124 = vmul.f32 %v1022, 0.01
    %v1125 = vmul.f32 %v1027, 0.01
    %v1126 = vmul.f32 %v1032, 0.01
    %v1127 = vmul.f32 %v1037, 0.01
    %v1128 = vmul.f32 %v1042, 0.01
    %v1129 = vmul.f32 %v1047, 0.01
    %v1130 = vmul.f32 %v1052, 0.01
    %v1131 = vmul.f32 %v1057, 0.01
    %v1132 = vmul.f32 %v1062, 0.01
    %v1133 = vmul.f32 %v1067, 0.01
    %v1134 = vsel %vm1070, %v912, %v1102
    %v1135 = vsel %vm1071, %v917, %v1103
    %v1136 = vsel %vm1072, %v922, %v1104
    %v1137 = vsel %vm1073, %v927, %v1105
    %v1138 = vsel %vm1074, %v932, %v1106
    %v1139 = vsel %vm1075, %v937, %v1107
    %v1140 = vsel %vm1076, %v942, %v1108
    %v1141 = vsel %vm1077, %v947, %v1109
    %v1142 = vsel %vm1078, %v952, %v1110
    %v1143 = vsel %vm1079, %v957, %v1111
    %v1144 = vsel %vm1080, %v962, %v1112
    %v1145 = vsel %vm1081, %v967, %v1113
    %v1146 = vsel %vm1082, %v972, %v1114
    %v1147 = vsel %vm1083, %v977, %v1115
    %v1148 = vsel %vm1084, %v982, %v1116
    %v1149 = vsel %vm1085, %v987, %v1117
    %v1150 = vsel %vm1086, %v992, %v1118
    %v1151 = vsel %vm1087, %v997, %v1119
    %v1152 = vsel %vm1088, %v1002, %v1120
    %v1153 = vsel %vm1089, %v1007, %v1121
    %v1154 = vsel %vm1090, %v1012, %v1122
    %v1155 = vsel %vm1091, %v1017, %v1123
    %v1156 = vsel %vm1092, %v1022, %v1124
    %v1157 = vsel %vm1093, %v1027, %v1125
    %v1158 = vsel %vm1094, %v1032, %v1126
    %v1159 = vsel %vm1095, %v1037, %v1127
    %v1160 = vsel %vm1096, %v1042, %v1128
    %v1161 = vsel %vm1097, %v1047, %v1129
    %v1162 = vsel %vm1098, %v1052, %v1130
    %v1163 = vsel %vm1099, %v1057, %v1131
    %v1164 = vsel %vm1100, %v1062, %v1132
    %v1165 = vsel %vm1101, %v1067, %v1133
    %v1166 = vld [vmem:[#allocation2 + $0x180] sm:$0xff]
    %v1167 = vld [vmem:[#allocation2 + $0x188] sm:$0xff]
    %v1168 = vld [vmem:[#allocation2 + $0x190] sm:$0xff]
    %v1169 = vld [vmem:[#allocation2 + $0x198] sm:$0xff]
    %v1170 = vld [vmem:[#allocation2 + $0x1a0] sm:$0xff]
    %v1171 = vld [vmem:[#allocation2 + $0x1a8] sm:$0xff]
    %v1172 = vld [vmem:[#allocation2 + $0x1b0] sm:$0xff]
    %v1173 = vld [vmem:[#allocation2 + $0x1b8] sm:$0xff]
    %v1174 = vld [vmem:[#allocation2 + $0x1c0] sm:$0xff]
    %v1175 = vld [vmem:[#allocation2 + $0x1c8] sm:$0xff]
    %v1176 = vld [vmem:[#allocation2 + $0x1d0] sm:$0xff]
    %v1177 = vld [vmem:[#allocation2 + $0x1d8] sm:$0xff]
    %v1178 = vld [vmem:[#allocation2 + $0x1e0] sm:$0xff]
    %v1179 = vld [vmem:[#allocation2 + $0x1e8] sm:$0xff]
    %v1180 = vld [vmem:[#allocation2 + $0x1f0] sm:$0xff]
    %v1181 = vld [vmem:[#allocation2 + $0x1f8] sm:$0xff]
    %v1182 = vld [vmem:[#allocation2 + $0x218] sm:$0x1]
    %v1183 = vlaneseq
    %v1184 = vshrl.u32 %v1183, 7
    %v1185 = vsub.s32 0, %v1184
    %v1186 = vrot.slane %v1182, %v1185
    %1187 = vmatprep.subr.mxu0 0.0
    %1188 = vmatpush1.msra.mxu0 %v1166
    %1189 = vmatprep.subr.mxu0 0.0
    %1190 = vmatpush1.msra.mxu0 %v1167
    %1191 = vmatprep.subr.mxu0 0.0
    %1192 = vmatpush1.msra.mxu0 %v1168
    %1193 = vmatprep.subr.mxu0 0.0
    %1194 = vmatpush1.msra.mxu0 %v1169
    %1195 = vmatprep.subr.mxu0 0.0
    %1196 = vmatpush1.msra.mxu0 %v1170
    %1197 = vmatprep.subr.mxu0 0.0
    %1198 = vmatpush1.msra.mxu0 %v1171
    %1199 = vmatprep.subr.mxu0 0.0
    %1200 = vmatpush1.msra.mxu0 %v1172
    %1201 = vmatprep.subr.mxu0 0.0
    %1202 = vmatpush1.msra.mxu0 %v1173
    %1203 = vmatprep.subr.mxu0 0.0
    %1204 = vmatpush1.msra.mxu0 %v1174
    %1205 = vmatprep.subr.mxu0 0.0
    %1206 = vmatpush1.msra.mxu0 %v1175
    %1207 = vmatprep.subr.mxu0 0.0
    %1208 = vmatpush1.msra.mxu0 %v1176
    %1209 = vmatprep.subr.mxu0 0.0
    %1210 = vmatpush1.msra.mxu0 %v1177
    %1211 = vmatprep.subr.mxu0 0.0
    %1212 = vmatpush1.msra.mxu0 %v1178
    %1213 = vmatprep.subr.mxu0 0.0
    %1214 = vmatpush1.msra.mxu0 %v1179
    %1215 = vmatprep.subr.mxu0 0.0
    %1216 = vmatpush1.msra.mxu0 %v1180
    %1217 = vmatprep.subr.mxu0 0.0
    %1218 = vmatpush1.msra.mxu0 %v1181
    %1219 = vmatprep.subr.mxu0 0.0
    %1220 = vmatpush1.msra.mxu0 0.0
    %1221 = vmatprep.subr.mxu0 0.0
    %1222 = vmatpush1.msra.mxu0 0.0
    %1223 = vmatprep.subr.mxu0 0.0
    %1224 = vmatpush1.msra.mxu0 0.0
    %1225 = vmatprep.subr.mxu0 0.0
    %1226 = vmatpush1.msra.mxu0 0.0
    %1227 = vmatprep.subr.mxu0 0.0
    %1228 = vmatpush1.msra.mxu0 0.0
    %1229 = vmatprep.subr.mxu0 0.0
    %1230 = vmatpush1.msra.mxu0 0.0
    %1231 = vmatprep.subr.mxu0 0.0
    %1232 = vmatpush1.msra.mxu0 0.0
    %1233 = vmatprep.subr.mxu0 0.0
    %1234 = vmatpush1.msra.mxu0 0.0
    %1235 = vmatprep.subr.mxu0 0.0
    %1236 = vmatpush1.msra.mxu0 0.0
    %1237 = vmatprep.subr.mxu0 0.0
    %1238 = vmatpush1.msra.mxu0 0.0
    %1239 = vmatprep.subr.mxu0 0.0
    %1240 = vmatpush1.msra.mxu0 0.0
    %1241 = vmatprep.subr.mxu0 0.0
    %1242 = vmatpush1.msra.mxu0 0.0
    %1243 = vmatprep.subr.mxu0 0.0
    %1244 = vmatpush1.msra.mxu0 0.0
    %1245 = vmatprep.subr.mxu0 0.0
    %1246 = vmatpush1.msra.mxu0 0.0
    %1247 = vmatprep.subr.mxu0 0.0
    %1248 = vmatpush1.msra.mxu0 0.0
    %1249 = vmatprep.subr.mxu0 0.0
    %1250 = vmatpush1.msra.mxu0 0.0
    %1251 = vmatprep.mubr.f32.mxu0 0.0
    %1252 = vmatmul.mubr.f32.gmra.mrb[0].mxu0 %v1134
    %v1253 = vpop.f32.mrb[0].mxu0
    %v1254 = vadd.f32 %v1186, %v1253
    %v1255 = vpop.f32.mrb[0].mxu0
    %1256 = vmatprep.mubr.f32.mxu0 0.0
    %1257 = vmatmul.mubr.f32.gmra.mrb[0].mxu0 %v1135
    %v1258 = vpop.f32.mrb[0].mxu0
    %v1259 = vadd.f32 %v1186, %v1258
    %v1260 = vpop.f32.mrb[0].mxu0
    %1261 = vmatprep.mubr.f32.mxu0 0.0
    %1262 = vmatmul.mubr.f32.gmra.mrb[0].mxu0 %v1136
    %v1263 = vpop.f32.mrb[0].mxu0
    %v1264 = vadd.f32 %v1186, %v1263
    %v1265 = vpop.f32.mrb[0].mxu0
    %1266 = vmatprep.mubr.f32.mxu0 0.0
    %1267 = vmatmul.mubr.f32.gmra.mrb[0].mxu0 %v1137
    %v1268 = vpop.f32.mrb[0].mxu0
    %v1269 = vadd.f32 %v1186, %v1268
    %v1270 = vpop.f32.mrb[0].mxu0
    %1271 = vmatprep.mubr.f32.mxu0 0.0
    %1272 = vmatmul.mubr.f32.gmra.mrb[0].mxu0 %v1138
    %v1273 = vpop.f32.mrb[0].mxu0
    %v1274 = vadd.f32 %v1186, %v1273
    %v1275 = vpop.f32.mrb[0].mxu0
    %1276 = vmatprep.mubr.f32.mxu0 0.0
    %1277 = vmatmul.mubr.f32.gmra.mrb[0].mxu0 %v1139
    %v1278 = vpop.f32.mrb[0].mxu0
    %v1279 = vadd.f32 %v1186, %v1278
    %v1280 = vpop.f32.mrb[0].mxu0
    %1281 = vmatprep.mubr.f32.mxu0 0.0
    %1282 = vmatmul.mubr.f32.gmra.mrb[0].mxu0 %v1140
    %v1283 = vpop.f32.mrb[0].mxu0
    %v1284 = vadd.f32 %v1186, %v1283
    %v1285 = vpop.f32.mrb[0].mxu0
    %1286 = vmatprep.mubr.f32.mxu0 0.0
    %1287 = vmatmul.mubr.f32.gmra.mrb[0].mxu0 %v1141
    %v1288 = vpop.f32.mrb[0].mxu0
    %v1289 = vadd.f32 %v1186, %v1288
    %v1290 = vpop.f32.mrb[0].mxu0
    %1291 = vmatprep.mubr.f32.mxu0 0.0
    %1292 = vmatmul.mubr.f32.gmra.mrb[0].mxu0 %v1142
    %v1293 = vpop.f32.mrb[0].mxu0
    %v1294 = vadd.f32 %v1186, %v1293
    %v1295 = vpop.f32.mrb[0].mxu0
    %1296 = vmatprep.mubr.f32.mxu0 0.0
    %1297 = vmatmul.mubr.f32.gmra.mrb[0].mxu0 %v1143
    %v1298 = vpop.f32.mrb[0].mxu0
    %v1299 = vadd.f32 %v1186, %v1298
    %v1300 = vpop.f32.mrb[0].mxu0
    %1301 = vmatprep.mubr.f32.mxu0 0.0
    %1302 = vmatmul.mubr.f32.gmra.mrb[0].mxu0 %v1144
    %v1303 = vpop.f32.mrb[0].mxu0
    %v1304 = vadd.f32 %v1186, %v1303
    %v1305 = vpop.f32.mrb[0].mxu0
    %1306 = vmatprep.mubr.f32.mxu0 0.0
    %1307 = vmatmul.mubr.f32.gmra.mrb[0].mxu0 %v1145
    %v1308 = vpop.f32.mrb[0].mxu0
    %v1309 = vadd.f32 %v1186, %v1308
    %v1310 = vpop.f32.mrb[0].mxu0
    %1311 = vmatprep.mubr.f32.mxu0 0.0
    %1312 = vmatmul.mubr.f32.gmra.mrb[0].mxu0 %v1146
    %v1313 = vpop.f32.mrb[0].mxu0
    %v1314 = vadd.f32 %v1186, %v1313
    %v1315 = vpop.f32.mrb[0].mxu0
    %1316 = vmatprep.mubr.f32.mxu0 0.0
    %1317 = vmatmul.mubr.f32.gmra.mrb[0].mxu0 %v1147
    %v1318 = vpop.f32.mrb[0].mxu0
    %v1319 = vadd.f32 %v1186, %v1318
    %v1320 = vpop.f32.mrb[0].mxu0
    %1321 = vmatprep.mubr.f32.mxu0 0.0
    %1322 = vmatmul.mubr.f32.gmra.mrb[0].mxu0 %v1148
    %v1323 = vpop.f32.mrb[0].mxu0
    %v1324 = vadd.f32 %v1186, %v1323
    %v1325 = vpop.f32.mrb[0].mxu0
    %1326 = vmatprep.mubr.f32.mxu0 0.0
    %1327 = vmatmul.mubr.f32.gmra.mrb[0].mxu0 %v1149
    %v1328 = vpop.f32.mrb[0].mxu0
    %v1329 = vadd.f32 %v1186, %v1328
    %v1330 = vpop.f32.mrb[0].mxu0
    %1331 = vmatprep.mubr.f32.mxu0 0.0
    %1332 = vmatmul.mubr.f32.gmra.mrb[0].mxu0 %v1150
    %v1333 = vpop.f32.mrb[0].mxu0
    %v1334 = vadd.f32 %v1186, %v1333
    %v1335 = vpop.f32.mrb[0].mxu0
    %1336 = vmatprep.mubr.f32.mxu0 0.0
    %1337 = vmatmul.mubr.f32.gmra.mrb[0].mxu0 %v1151
    %v1338 = vpop.f32.mrb[0].mxu0
    %v1339 = vadd.f32 %v1186, %v1338
    %v1340 = vpop.f32.mrb[0].mxu0
    %1341 = vmatprep.mubr.f32.mxu0 0.0
    %1342 = vmatmul.mubr.f32.gmra.mrb[0].mxu0 %v1152
    %v1343 = vpop.f32.mrb[0].mxu0
    %v1344 = vadd.f32 %v1186, %v1343
    %v1345 = vpop.f32.mrb[0].mxu0
    %1346 = vmatprep.mubr.f32.mxu0 0.0
    %1347 = vmatmul.mubr.f32.gmra.mrb[0].mxu0 %v1153
    %v1348 = vpop.f32.mrb[0].mxu0
    %v1349 = vadd.f32 %v1186, %v1348
    %v1350 = vpop.f32.mrb[0].mxu0
    %1351 = vmatprep.mubr.f32.mxu0 0.0
    %1352 = vmatmul.mubr.f32.gmra.mrb[0].mxu0 %v1154
    %v1353 = vpop.f32.mrb[0].mxu0
    %v1354 = vadd.f32 %v1186, %v1353
    %v1355 = vpop.f32.mrb[0].mxu0
    %1356 = vmatprep.mubr.f32.mxu0 0.0
    %1357 = vmatmul.mubr.f32.gmra.mrb[0].mxu0 %v1155
    %v1358 = vpop.f32.mrb[0].mxu0
    %v1359 = vadd.f32 %v1186, %v1358
    %v1360 = vpop.f32.mrb[0].mxu0
    %1361 = vmatprep.mubr.f32.mxu0 0.0
    %1362 = vmatmul.mubr.f32.gmra.mrb[0].mxu0 %v1156
    %v1363 = vpop.f32.mrb[0].mxu0
    %v1364 = vadd.f32 %v1186, %v1363
    %v1365 = vpop.f32.mrb[0].mxu0
    %1366 = vmatprep.mubr.f32.mxu0 0.0
    %1367 = vmatmul.mubr.f32.gmra.mrb[0].mxu0 %v1157
    %v1368 = vpop.f32.mrb[0].mxu0
    %v1369 = vadd.f32 %v1186, %v1368
    %v1370 = vpop.f32.mrb[0].mxu0
    %1371 = vmatprep.mubr.f32.mxu0 0.0
    %1372 = vmatmul.mubr.f32.gmra.mrb[0].mxu0 %v1158
    %v1373 = vpop.f32.mrb[0].mxu0
    %v1374 = vadd.f32 %v1186, %v1373
    %v1375 = vpop.f32.mrb[0].mxu0
    %1376 = vmatprep.mubr.f32.mxu0 0.0
    %1377 = vmatmul.mubr.f32.gmra.mrb[0].mxu0 %v1159
    %v1378 = vpop.f32.mrb[0].mxu0
    %v1379 = vadd.f32 %v1186, %v1378
    %v1380 = vpop.f32.mrb[0].mxu0
    %1381 = vmatprep.mubr.f32.mxu0 0.0
    %1382 = vmatmul.mubr.f32.gmra.mrb[0].mxu0 %v1160
    %v1383 = vpop.f32.mrb[0].mxu0
    %v1384 = vadd.f32 %v1186, %v1383
    %v1385 = vpop.f32.mrb[0].mxu0
    %1386 = vmatprep.mubr.f32.mxu0 0.0
    %1387 = vmatmul.mubr.f32.gmra.mrb[0].mxu0 %v1161
    %v1388 = vpop.f32.mrb[0].mxu0
    %v1389 = vadd.f32 %v1186, %v1388
    %v1390 = vpop.f32.mrb[0].mxu0
    %1391 = vmatprep.mubr.f32.mxu0 0.0
    %1392 = vmatmul.mubr.f32.gmra.mrb[0].mxu0 %v1162
    %v1393 = vpop.f32.mrb[0].mxu0
    %v1394 = vadd.f32 %v1186, %v1393
    %v1395 = vpop.f32.mrb[0].mxu0
    %1396 = vmatprep.mubr.f32.mxu0 0.0
    %1397 = vmatmul.mubr.f32.gmra.mrb[0].mxu0 %v1163
    %v1398 = vpop.f32.mrb[0].mxu0
    %v1399 = vadd.f32 %v1186, %v1398
    %v1400 = vpop.f32.mrb[0].mxu0
    %1401 = vmatprep.mubr.f32.mxu0 0.0
    %1402 = vmatmul.mubr.f32.gmra.mrb[0].mxu0 %v1164
    %v1403 = vpop.f32.mrb[0].mxu0
    %v1404 = vadd.f32 %v1186, %v1403
    %v1405 = vpop.f32.mrb[0].mxu0
    %1406 = vmatprep.mubr.f32.mxu0 0.0
    %1407 = vmatmul.mubr.f32.gmra.mrb[0].mxu0 %v1165
    %v1408 = vpop.f32.mrb[0].mxu0
    %v1409 = vadd.f32 %v1186, %v1408
    %v1410 = vpop.f32.mrb[0].mxu0
    %1411 = vdwg.mxu0
    %vm1412 = vcmask 7168
    %1413 = vst.msk [vmem:[%s2] sm:$0xff] %vm1412, %v1254
    %1414 = vst.msk [vmem:[%s2 + $0x8] sm:$0xff] %vm1412, %v1259
    %1415 = vst.msk [vmem:[%s2 + $0x10] sm:$0xff] %vm1412, %v1264
    %1416 = vst.msk [vmem:[%s2 + $0x18] sm:$0xff] %vm1412, %v1269
    %1417 = vst.msk [vmem:[%s2 + $0x20] sm:$0xff] %vm1412, %v1274
    %1418 = vst.msk [vmem:[%s2 + $0x28] sm:$0xff] %vm1412, %v1279
    %1419 = vst.msk [vmem:[%s2 + $0x30] sm:$0xff] %vm1412, %v1284
    %1420 = vst.msk [vmem:[%s2 + $0x38] sm:$0xff] %vm1412, %v1289
    %1421 = vst.msk [vmem:[%s2 + $0x40] sm:$0xff] %vm1412, %v1294
    %1422 = vst.msk [vmem:[%s2 + $0x48] sm:$0xff] %vm1412, %v1299
    %1423 = vst.msk [vmem:[%s2 + $0x50] sm:$0xff] %vm1412, %v1304
    %1424 = vst.msk [vmem:[%s2 + $0x58] sm:$0xff] %vm1412, %v1309
    %1425 = vst.msk [vmem:[%s2 + $0x60] sm:$0xff] %vm1412, %v1314
    %1426 = vst.msk [vmem:[%s2 + $0x68] sm:$0xff] %vm1412, %v1319
    %1427 = vst.msk [vmem:[%s2 + $0x70] sm:$0xff] %vm1412, %v1324
    %1428 = vst.msk [vmem:[%s2 + $0x78] sm:$0xff] %vm1412, %v1329
    %1429 = vst.msk [vmem:[%s2 + $0x80] sm:$0xff] %vm1412, %v1334
    %1430 = vst.msk [vmem:[%s2 + $0x88] sm:$0xff] %vm1412, %v1339
    %1431 = vst.msk [vmem:[%s2 + $0x90] sm:$0xff] %vm1412, %v1344
    %1432 = vst.msk [vmem:[%s2 + $0x98] sm:$0xff] %vm1412, %v1349
    %1433 = vst.msk [vmem:[%s2 + $0xa0] sm:$0xff] %vm1412, %v1354
    %1434 = vst.msk [vmem:[%s2 + $0xa8] sm:$0xff] %vm1412, %v1359
    %1435 = vst.msk [vmem:[%s2 + $0xb0] sm:$0xff] %vm1412, %v1364
    %1436 = vst.msk [vmem:[%s2 + $0xb8] sm:$0xff] %vm1412, %v1369
    %1437 = vst.msk [vmem:[%s2 + $0xc0] sm:$0xff] %vm1412, %v1374
    %1438 = vst.msk [vmem:[%s2 + $0xc8] sm:$0xff] %vm1412, %v1379
    %1439 = vst.msk [vmem:[%s2 + $0xd0] sm:$0xff] %vm1412, %v1384
    %1440 = vst.msk [vmem:[%s2 + $0xd8] sm:$0xff] %vm1412, %v1389
    %1441 = vst.msk [vmem:[%s2 + $0xe0] sm:$0xff] %vm1412, %v1394
    %1442 = vst.msk [vmem:[%s2 + $0xe8] sm:$0xff] %vm1412, %v1399
    %1443 = vst.msk [vmem:[%s2 + $0xf0] sm:$0xff] %vm1412, %v1404
    %1444 = vst.msk [vmem:[%s2 + $0xf8] sm:$0xff] %vm1412, %v1409
    // Predicated region
    $region14: #{tpu_custom_call.1} parent=1 // pred_check
      _
    $region15: #{tpu_custom_call.1} parent=1 // pred_check_branch
      %1446 = sbr.rel (0) target = $region17
    $region16: #{tpu_custom_call.1} parent=1 // pred_region
      _
    $region17: #{tpu_custom_call.1} parent=1 // pred_fallthru
      _
    // Predicated region
    $region18: #{tpu_custom_call.1} parent=1 // pred_check
      _
    $region19: #{tpu_custom_call.1} parent=1 // pred_check_branch
      %1448 = sbr.rel (0) target = $region21
    $region20: #{tpu_custom_call.1} parent=1 // pred_region
      _
    $region21: #{tpu_custom_call.1} parent=1 // pred_fallthru
      _
    %1449 = vsyncpa [#allocation3], 1

</llo_original>
